<compile_context>
chip_gen: v7x
topology: tpu7x:2x2x1
jax: 0.10.0
libtpu: 0.0.40
codegen_flags: <defaults>
</compile_context>

<pallas_src>
import functools

import jax
import jax.numpy as jnp
from jax.experimental import pallas as pl
from jax.experimental.pallas import tpu as pltpu

BN_EPS = 1e-5


# ------------------------------ kernel helpers ------------------------------ #

def _elu(x):
    return jnp.where(x > 0, x, jnp.exp(jnp.minimum(x, 0.0)) - 1.0)


def _conv_epilogue(y, aux_ref):
    # ConvBlock tail (act_before_norm=True): +bias, ELU, folded eval-mode BatchNorm.
    aux = aux_ref[...]
    return _elu(y + aux[:, 0:1]) * aux[:, 1:2] + aux[:, 2:3]


def _mxu(w, x):
    # Weights are pre-cast (bf16 or f32) at init; only the activation is cast here.
    return jnp.dot(w, x.astype(w.dtype), preferred_element_type=jnp.float32)


# ------------------------------- fused kernel ------------------------------- #

def _xconv_fused_kernel(p_ref, sf_ref,
                        w1_ref, a1_ref, w2_ref, a2_ref,
                        ws_ref, as_ref, g1_ref, ag1_ref, g2_ref, ag2_ref,
                        wdwsf_ref, wdwh_ref, wpwsf_ref, wpwh_ref, apw_ref,
                        out_ref, *, dm):
    TB = p_ref.shape[1]
    Cout = out_ref.shape[0]

    P = p_ref[...]               # (3K, TB)     f32, row = c*K + a   (a = neighbor)
    SF = sf_ref[...]             # (Cin*K, TB)  f32, row = c*K + a

    # ---- x_shared_mlp: stem + two grouped layers (XReshape perms folded into weights).
    s0 = _conv_epilogue(_mxu(ws_ref[...], P), as_ref)        # (K*K, TB)
    y1 = _conv_epilogue(_mxu(g1_ref[...], s0), ag1_ref)      # (K*K, TB)
    y2 = _conv_epilogue(_mxu(g2_ref[...], y1), ag2_ref)      # (K*K, TB), row = a*K + j

    # ---- f_shared_mlp for all K neighbors at once (kron(W, I_K) block weights).
    h1 = _conv_epilogue(_mxu(w1_ref[...], P), a1_ref)        # (H*K, TB), row = h*K + a
    h2 = _conv_epilogue(_mxu(w2_ref[...], h1), a2_ref)       # (H*K, TB)

    # ---- X-transform + depthwise conv (Z = blk(w_dw) @ y2) with the neighbor reduction
    #      folded into the expanded pointwise weights: acc[o] = sum_{c,a} pw[o,c]*F[c,a]*Z[c,a].
    acc = jnp.zeros((Cout, TB), jnp.float32)
    for d in range(dm):                                      # dm is 1 in practice
        z_sf = _mxu(wdwsf_ref[d], y2)                        # (Cin*K, TB), row = c*K + a
        z_h = _mxu(wdwh_ref[d], y2)                          # (H*K, TB),   row = h*K + a
        acc = acc + _mxu(wpwsf_ref[d], SF * z_sf)            # (Cout, TB)
        acc = acc + _mxu(wpwh_ref[d], h2 * z_h)

    out_ref[...] = _conv_epilogue(acc, apw_ref).astype(out_ref.dtype)   # lane-dense (Cout, TB)


# ------------------------------- wrapper glue ------------------------------- #

def _pick_tile(bm):
    # Largest lane tile that still leaves >= 2 grid steps (so v7x's two TensorCores both
    # get work); tiny problems collapse to one 128-wide step.
    for tb in (1024, 512, 256):
        if bm >= 2 * tb:
            return tb
    return 128


def _bcast_spec(shape):
    nd = len(shape)
    return pl.BlockSpec(tuple(shape), lambda i, _z=(0,) * nd: _z)


def xconv_forward(params, q_points, s_points, s_feats, neighbor_indices, *,
                  kernel_size, input_dim, output_dim, hidden_dim, depth_multiplier=1):
    """Fused XConv forward.  `params` must come from prepare_xconv_params()."""
    assert s_feats is not None and input_dim > 0  # TODO(synk): s_feats=None path
    K, Cin, dm, Cout = kernel_size, input_dim, depth_multiplier, output_dim
    B, _, M = q_points.shape
    BM = B * M
    assert params["w2_blk"].shape[0] == hidden_dim * K

    # Neighbor gather + centering (XLA side), produced directly in the kernel's
    # (channel*K + neighbor, batch*point) layout so no extra transposed copy of the big
    # gathered tensors is materialized.
    def gather_ck(pts, idx):                                  # (C, N), (M, K) -> (C, K, M)
        return pts[:, idx].transpose(0, 2, 1)

    gather = jax.vmap(gather_ck, in_axes=(0, 0), out_axes=2)  # -> (C, K, B, M)
    aligned = gather(s_points, neighbor_indices) - q_points.transpose(1, 0, 2)[:, None, :, :]
    P = aligned.reshape(3 * K, BM).astype(jnp.float32)                          # row = c*K + a
    SF = gather(s_feats, neighbor_indices).reshape(Cin * K, BM).astype(jnp.float32)

    TB = _pick_tile(BM)
    BMp = ((BM + TB - 1) // TB) * TB
    if BMp != BM:                                             # pad lanes; tail sliced off below
        P = jnp.pad(P, ((0, 0), (0, BMp - BM)))
        SF = jnp.pad(SF, ((0, 0), (0, BMp - BM)))

    q = params
    weights = (q["w1_blk"], q["a1_blk"], q["w2_blk"], q["a2_blk"],
               q["w_stem"], q["a_stem"], q["g1"], q["a_g1"], q["g2"], q["a_g2"],
               q["w_dw_sf_blk"], q["w_dw_h_blk"], q["w_pw_sf_exp"], q["w_pw_h_exp"],
               q["a_pw"])

    kern = functools.partial(_xconv_fused_kernel, dm=dm)
    out_pad = pl.pallas_call(
        kern,
        out_shape=jax.ShapeDtypeStruct((Cout, BMp), jnp.float32),
        grid=(BMp // TB,),
        in_specs=[pl.BlockSpec((3 * K, TB), lambda i: (0, i)),
                  pl.BlockSpec((Cin * K, TB), lambda i: (0, i))]
                 + [_bcast_spec(w.shape) for w in weights],   # constant-index weight blocks
        out_specs=pl.BlockSpec((Cout, TB), lambda i: (0, i)),
        compiler_params=pltpu.CompilerParams(dimension_semantics=("parallel",)),
    )(P, SF, *weights)

    return out_pad[:, :BM].reshape(Cout, B, M).transpose(1, 0, 2)    # (B, Cout, M)


# --------------------------- parameter construction -------------------------- #

def _bn_params(key, c):
    k1, k2 = jax.random.split(key)
    return dict(gamma=(1.0 + 0.1 * jax.random.normal(k1, (c,))).astype(jnp.float32),
                beta=(0.1 * jax.random.normal(k2, (c,))).astype(jnp.float32),
                mean=jnp.zeros((c,), jnp.float32),
                var=jnp.ones((c,), jnp.float32))


def init_xconv_params(key, input_dim, output_dim, hidden_dim, kernel_size, depth_multiplier=1):
    """Raw parameters mirroring the PyTorch module's tensors (eval-mode BN stats)."""
    K = kernel_size
    C = input_dim + hidden_dim
    dm = depth_multiplier
    keys = jax.random.split(key, 19)

    def w(k, shape):
        fan_in = 1
        for s in shape[1:]:
            fan_in *= s
        return (jax.random.normal(k, shape) / jnp.sqrt(float(fan_in))).astype(jnp.float32)

    def b(k, c):
        return (0.05 * jax.random.normal(k, (c,))).astype(jnp.float32)

    p = {}
    # f_shared_mlp: Conv2d(3,hidden,1) + Conv2d(hidden,hidden,1)
    p["f1_w"], p["f1_b"], p["f1_bn"] = w(keys[0], (hidden_dim, 3)), b(keys[1], hidden_dim), _bn_params(keys[2], hidden_dim)
    p["f2_w"], p["f2_b"], p["f2_bn"] = w(keys[3], (hidden_dim, hidden_dim)), b(keys[4], hidden_dim), _bn_params(keys[5], hidden_dim)
    # x_shared_mlp stem: Conv2d(3, K*K, kernel=(1,K))
    p["stem_w"], p["stem_b"], p["stem_bn"] = w(keys[6], (K * K, 3, 1, K)), b(keys[7], K * K), _bn_params(keys[8], K * K)
    # x_shared_mlp grouped layers: Conv2d(K, K*K, kernel=(K,1), groups=K)
    p["xl1_w"], p["xl1_b"], p["xl1_bn"] = w(keys[9], (K * K, 1, K, 1)), b(keys[10], K * K), _bn_params(keys[11], K * K)
    p["xl2_w"], p["xl2_b"], p["xl2_bn"] = w(keys[12], (K * K, 1, K, 1)), b(keys[13], K * K), _bn_params(keys[14], K * K)
    # SeparableConv2d(C, output_dim, kernel=(1,K), depth_multiplier=dm)
    p["dw_w"] = w(keys[15], (C * dm, 1, 1, K))                        # depthwise, bias=False
    p["pw_w"], p["pw_b"], p["pw_bn"] = w(keys[16], (output_dim, C * dm)), b(keys[17], output_dim), _bn_params(keys[18], output_dim)
    return p


def _fold_bn(bias, bn):
    s = bn["gamma"] / jnp.sqrt(bn["var"] + BN_EPS)
    t = bn["beta"] - bn["mean"] * s
    return jnp.stack([bias, s, t], axis=1).astype(jnp.float32)        # (ch, 3): bias, scale, shift


def _grouped_to_dense(wgt, K, input_is_xreshaped):
    # grouped Conv2d weight (K*K, 1, K, 1), groups=K -> dense (K*K, K*K) with the layer's
    # input permutation folded in (column = g*K+h for stem layout, h*K+g after an XReshape).
    w2 = wgt.reshape(K * K, K)                                        # [o, h]
    o = jnp.arange(K * K)
    g = o // K
    h = jnp.arange(K)
    if input_is_xreshaped:
        cols = h[None, :] * K + g[:, None]
    else:
        cols = g[:, None] * K + h[None, :]
    return jnp.zeros((K * K, K * K), jnp.float32).at[o[:, None], cols].set(w2)


def prepare_xconv_params(p, *, kernel_size, input_dim, output_dim, hidden_dim,
                         depth_multiplier=1, mxu_bf16=True):
    """One-time derivation of all fused-kernel weights (done at init, not per forward)."""
    K, Cin, H, dm, Cout = kernel_size, input_dim, hidden_dim, depth_multiplier, output_dim
    C = Cin + H
    wdt = jnp.bfloat16 if mxu_bf16 else jnp.float32
    eyeK = jnp.eye(K, dtype=jnp.float32)
    q = {}

    # f_shared_mlp for all K neighbors: h[h*K+a] = epi(sum_c f1_w[h,c] * P[c*K+a]).
    q["w1_blk"] = jnp.kron(p["f1_w"], eyeK).astype(wdt)                          # (H*K, 3*K)
    q["a1_blk"] = jnp.repeat(_fold_bn(p["f1_b"], p["f1_bn"]), K, axis=0)
    q["w2_blk"] = jnp.kron(p["f2_w"], eyeK).astype(wdt)                          # (H*K, H*K)
    q["a2_blk"] = jnp.repeat(_fold_bn(p["f2_b"], p["f2_bn"]), K, axis=0)

    # x_shared_mlp (stem + two grouped layers); XReshape permutations folded in.
    q["w_stem"] = p["stem_w"].reshape(K * K, 3 * K).astype(wdt)
    q["a_stem"] = _fold_bn(p["stem_b"], p["stem_bn"])
    q["g1"] = _grouped_to_dense(p["xl1_w"], K, input_is_xreshaped=False).astype(wdt)
    q["a_g1"] = _fold_bn(p["xl1_b"], p["xl1_bn"])
    q["g2"] = _grouped_to_dense(p["xl2_w"], K, input_is_xreshaped=True).astype(wdt)
    q["a_g2"] = _fold_bn(p["xl2_b"], p["xl2_bn"])

    # Depthwise conv through the X-transform: Z[c*K+a] = sum_j dw[c,d,j] * y2[a*K+j]
    # -> block matrix blk[c*K+a, a'*K+j] = dw[c,d,j] * I[a,a'].
    dw3 = p["dw_w"].reshape(C, dm, K)                                            # [c, d, j]
    q["w_dw_sf_blk"] = (jnp.einsum("cdj,aA->dcaAj", dw3[:Cin], eyeK)
                        .reshape(dm, Cin * K, K * K).astype(wdt))
    q["w_dw_h_blk"] = (jnp.einsum("hdj,aA->dhaAj", dw3[Cin:], eyeK)
                       .reshape(dm, H * K, K * K).astype(wdt))

    # Pointwise conv with the neighbor (a) reduction folded in: column c*K+a carries pw[o,c*dm+d].
    pw3 = p["pw_w"].reshape(Cout, C, dm)                                         # [o, c, d]
    q["w_pw_sf_exp"] = jnp.repeat(pw3[:, :Cin, :], K, axis=1).transpose(2, 0, 1).astype(wdt)
    q["w_pw_h_exp"] = jnp.repeat(pw3[:, Cin:, :], K, axis=1).transpose(2, 0, 1).astype(wdt)
    q["a_pw"] = _fold_bn(p["pw_b"], p["pw_bn"])
    return q


# --------------------------- pure-jnp correctness oracle --------------------------- #

def _xconv_reference_jax(p, q_points, s_points, s_feats, idx, *, K, Cin, H, Cout, dm):
    """Straight jnp translation of the PyTorch XConv forward (eval-mode BN)."""
    ein = functools.partial(jnp.einsum, precision="highest")
    B, _, M = q_points.shape
    C = Cin + H

    def epi(y, bias, bn, axis=1):
        sh = [1] * y.ndim
        sh[axis] = -1
        s = bn["gamma"] / jnp.sqrt(bn["var"] + BN_EPS)
        t = bn["beta"] - bn["mean"] * s
        return _elu(y + bias.reshape(sh)) * s.reshape(sh) + t.reshape(sh)

    gather = jax.vmap(lambda pts, ind: pts[:, ind])                    # (C,N),(M,K)->(C,M,K)
    aligned = gather(s_points, idx) - q_points[:, :, :, None]          # (B,3,M,K)

    f1 = epi(ein("hc,bcmk->bhmk", p["f1_w"], aligned), p["f1_b"], p["f1_bn"])
    f2 = epi(ein("oh,bhmk->bomk", p["f2_w"], f1), p["f2_b"], p["f2_bn"])     # (B,H,M,K)
    feats = jnp.concatenate([gather(s_feats, idx), f2], axis=1)              # (B,C,M,K)

    stem = epi(ein("ock,bcmk->bom", p["stem_w"].reshape(K * K, 3, K), aligned),
               p["stem_b"], p["stem_bn"])                                    # (B,K*K,M)
    x4 = stem.reshape(B, K, K, M)                                            # (B, g, h, M)

    def grouped(x, w, bias, bn):
        w3 = w.reshape(K, K, K)                                              # [g, u, h]
        return epi(ein("guh,bghm->bgum", w3, x).reshape(B, K * K, M), bias, bn)

    def xreshape(y):                                                         # (B,K*K,M)->(B,K,K,M)
        return y.reshape(B, K, K, M).transpose(0, 2, 1, 3)

    x4 = xreshape(grouped(x4, p["xl1_w"], p["xl1_b"], p["xl1_bn"]))
    xout = xreshape(grouped(x4, p["xl2_w"], p["xl2_b"], p["xl2_bn"]))        # (B, p, q, M)

    x = xout.transpose(0, 3, 2, 1)                                           # (B, M, q, p)
    qf = ein("bcmq,bmqp->bcmp", feats, x)                                    # (B, C, M, K)

    dw = p["dw_w"].reshape(C, dm, K)
    dwy = ein("cdp,bcmp->bcdm", dw, qf).reshape(B, C * dm, M)
    return epi(ein("oc,bcm->bom", p["pw_w"], dwy), p["pw_b"], p["pw_bn"])    # (B,Cout,M)


# ----------------------------------- main ----------------------------------- #

if __name__ == "__main__":
    B, M, N = 2, 16, 32
    K = 8                                    # kernel_size == num_neighbors
    input_dim, hidden_dim, output_dim = 4, 16, 32
    dm = 1

    key = jax.random.PRNGKey(0)
    kq, ks, kf, ki, kp = jax.random.split(key, 5)
    q_points = jax.random.normal(kq, (B, 3, M), jnp.float32)
    s_points = jax.random.normal(ks, (B, 3, N), jnp.float32)
    s_feats = jax.random.normal(kf, (B, input_dim, N), jnp.float32)
    neighbor_indices = jax.random.randint(ki, (B, M, K), 0, N)

    raw = init_xconv_params(kp, input_dim, output_dim, hidden_dim, K, dm)
    params = prepare_xconv_params(raw, kernel_size=K, input_dim=input_dim,
                                  output_dim=output_dim, hidden_dim=hidden_dim,
                                  depth_multiplier=dm, mxu_bf16=True)

    fwd = jax.jit(functools.partial(
        xconv_forward, kernel_size=K, input_dim=input_dim, output_dim=output_dim,
        hidden_dim=hidden_dim, depth_multiplier=dm))
    out = jax.block_until_ready(fwd(params, q_points, s_points, s_feats, neighbor_indices))
    assert out.shape == (B, output_dim, M), out.shape
    assert bool(jnp.all(jnp.isfinite(out)))

    # Numerical check against the jnp translation of the PyTorch forward (addresses the
    # X-transform orientation concern).  Tolerance is sized for the bf16 MXU path; a
    # layout/transpose bug produces errors on the order of |ref| itself.
    ref = _xconv_reference_jax(raw, q_points, s_points, s_feats, neighbor_indices,
                               K=K, Cin=input_dim, H=hidden_dim, Cout=output_dim, dm=dm)
    err = float(jnp.max(jnp.abs(out - ref)))
    tol = 0.05 * float(jnp.max(jnp.abs(ref))) + 0.15
    assert err <= tol, ("kernel vs reference mismatch", err, tol)

    print("KERNEL_OK")
</pallas_src>

<mosaic_0001>
module attributes {stable_mosaic.version = 11 : i64} {
  func.func @_xconv_fused_kernel(%arg0: i32, %arg1: memref<24x128xf32, #tpu.memory_space<vmem>>, %arg2: memref<32x128xf32, #tpu.memory_space<vmem>>, %arg3: memref<128x24xbf16, #tpu.memory_space<vmem>>, %arg4: memref<128x3xf32, #tpu.memory_space<vmem>>, %arg5: memref<128x128xbf16, #tpu.memory_space<vmem>>, %arg6: memref<128x3xf32, #tpu.memory_space<vmem>>, %arg7: memref<64x24xbf16, #tpu.memory_space<vmem>>, %arg8: memref<64x3xf32, #tpu.memory_space<vmem>>, %arg9: memref<64x64xbf16, #tpu.memory_space<vmem>>, %arg10: memref<64x3xf32, #tpu.memory_space<vmem>>, %arg11: memref<64x64xbf16, #tpu.memory_space<vmem>>, %arg12: memref<64x3xf32, #tpu.memory_space<vmem>>, %arg13: memref<1x32x64xbf16, #tpu.memory_space<vmem>>, %arg14: memref<1x128x64xbf16, #tpu.memory_space<vmem>>, %arg15: memref<1x32x32xbf16, #tpu.memory_space<vmem>>, %arg16: memref<1x32x128xbf16, #tpu.memory_space<vmem>>, %arg17: memref<32x3xf32, #tpu.memory_space<vmem>>, %arg18: memref<32x128xf32, #tpu.memory_space<vmem>>) attributes {dimension_semantics = [#tpu.dimension_semantics<parallel>], iteration_bounds = array<i64: 1>, scalar_prefetch = 0 : i64, scratch_operands = 0 : i64, tpu.core_type = #tpu.core_type<tc>, window_params = [{transform_indices = @transform_0, window_bounds = array<i64: 24, 128>}, {transform_indices = @transform_1, window_bounds = array<i64: 32, 128>}, {pipeline_mode = #tpu.pipeline_mode<synchronous>, transform_indices = @transform_2, window_bounds = array<i64: 128, 24>}, {pipeline_mode = #tpu.pipeline_mode<synchronous>, transform_indices = @transform_3, window_bounds = array<i64: 128, 3>}, {pipeline_mode = #tpu.pipeline_mode<synchronous>, transform_indices = @transform_4, window_bounds = array<i64: 128, 128>}, {pipeline_mode = #tpu.pipeline_mode<synchronous>, transform_indices = @transform_5, window_bounds = array<i64: 128, 3>}, {pipeline_mode = #tpu.pipeline_mode<synchronous>, transform_indices = @transform_6, window_bounds = array<i64: 64, 24>}, {pipeline_mode = #tpu.pipeline_mode<synchronous>, transform_indices = @transform_7, window_bounds = array<i64: 64, 3>}, {pipeline_mode = #tpu.pipeline_mode<synchronous>, transform_indices = @transform_8, window_bounds = array<i64: 64, 64>}, {pipeline_mode = #tpu.pipeline_mode<synchronous>, transform_indices = @transform_9, window_bounds = array<i64: 64, 3>}, {pipeline_mode = #tpu.pipeline_mode<synchronous>, transform_indices = @transform_10, window_bounds = array<i64: 64, 64>}, {pipeline_mode = #tpu.pipeline_mode<synchronous>, transform_indices = @transform_11, window_bounds = array<i64: 64, 3>}, {pipeline_mode = #tpu.pipeline_mode<synchronous>, transform_indices = @transform_12, window_bounds = array<i64: 1, 32, 64>}, {pipeline_mode = #tpu.pipeline_mode<synchronous>, transform_indices = @transform_13, window_bounds = array<i64: 1, 128, 64>}, {pipeline_mode = #tpu.pipeline_mode<synchronous>, transform_indices = @transform_14, window_bounds = array<i64: 1, 32, 32>}, {pipeline_mode = #tpu.pipeline_mode<synchronous>, transform_indices = @transform_15, window_bounds = array<i64: 1, 32, 128>}, {pipeline_mode = #tpu.pipeline_mode<synchronous>, transform_indices = @transform_16, window_bounds = array<i64: 32, 3>}, {transform_indices = @transform_17, window_bounds = array<i64: 32, 128>}]} {
    %c0 = arith.constant 0 : index
    %c0_0 = arith.constant 0 : index
    %0 = vector.load %arg1[%c0, %c0_0] : memref<24x128xf32, #tpu.memory_space<vmem>>, vector<24x128xf32>
    %c0_1 = arith.constant 0 : index
    %c0_2 = arith.constant 0 : index
    %1 = vector.load %arg2[%c0_1, %c0_2] : memref<32x128xf32, #tpu.memory_space<vmem>>, vector<32x128xf32>
    %c0_3 = arith.constant 0 : index
    %c0_4 = arith.constant 0 : index
    %2 = vector.load %arg7[%c0_3, %c0_4] : memref<64x24xbf16, #tpu.memory_space<vmem>>, vector<64x24xbf16>
    %3 = arith.truncf %0 : vector<24x128xf32> to vector<24x128xbf16>
    %cst = arith.constant dense<0.000000e+00> : vector<64x128xf32>
    %4 = tpu.matmul %2, %3, %cst {dimension_numbers = #tpu.dot_dimension_numbers<[1], [0], [0], [1], [0, 0, 1, 1], [], []>} : vector<64x24xbf16>, vector<24x128xbf16>, vector<64x128xf32> -> vector<64x128xf32>
    %c0_5 = arith.constant 0 : index
    %c0_6 = arith.constant 0 : index
    %5 = vector.load %arg8[%c0_5, %c0_6] : memref<64x3xf32, #tpu.memory_space<vmem>>, vector<64x3xf32>
    %6 = vector.extract_strided_slice %5 {offsets = [0, 0], sizes = [64, 1], strides = [1, 1]} : vector<64x3xf32> to vector<64x1xf32>
    %7 = vector.broadcast %6 : vector<64x1xf32> to vector<64x128xf32>
    %8 = arith.addf %4, %7 : vector<64x128xf32>
    %cst_7 = arith.constant 0.000000e+00 : f32
    %9 = vector.broadcast %cst_7 : f32 to vector<64x128xf32>
    %10 = arith.cmpf ogt, %8, %9 : vector<64x128xf32>
    %cst_8 = arith.constant 0.000000e+00 : f32
    %11 = vector.broadcast %cst_8 : f32 to vector<64x128xf32>
    %12 = arith.minimumf %8, %11 : vector<64x128xf32>
    %13 = math.exp %12 : vector<64x128xf32>
    %cst_9 = arith.constant 1.000000e+00 : f32
    %14 = vector.broadcast %cst_9 : f32 to vector<64x128xf32>
    %15 = arith.subf %13, %14 : vector<64x128xf32>
    %16 = arith.select %10, %8, %15 : vector<64x128xi1>, vector<64x128xf32>
    %17 = vector.extract_strided_slice %5 {offsets = [0, 1], sizes = [64, 1], strides = [1, 1]} : vector<64x3xf32> to vector<64x1xf32>
    %18 = vector.broadcast %17 : vector<64x1xf32> to vector<64x128xf32>
    %19 = arith.mulf %16, %18 : vector<64x128xf32>
    %20 = vector.extract_strided_slice %5 {offsets = [0, 2], sizes = [64, 1], strides = [1, 1]} : vector<64x3xf32> to vector<64x1xf32>
    %21 = vector.broadcast %20 : vector<64x1xf32> to vector<64x128xf32>
    %22 = arith.addf %19, %21 : vector<64x128xf32>
    %c0_10 = arith.constant 0 : index
    %c0_11 = arith.constant 0 : index
    %23 = vector.load %arg9[%c0_10, %c0_11] : memref<64x64xbf16, #tpu.memory_space<vmem>>, vector<64x64xbf16>
    %24 = arith.truncf %22 : vector<64x128xf32> to vector<64x128xbf16>
    %cst_12 = arith.constant dense<0.000000e+00> : vector<64x128xf32>
    %25 = tpu.matmul %23, %24, %cst_12 {dimension_numbers = #tpu.dot_dimension_numbers<[1], [0], [0], [1], [0, 0, 1, 1], [], []>} : vector<64x64xbf16>, vector<64x128xbf16>, vector<64x128xf32> -> vector<64x128xf32>
    %c0_13 = arith.constant 0 : index
    %c0_14 = arith.constant 0 : index
    %26 = vector.load %arg10[%c0_13, %c0_14] : memref<64x3xf32, #tpu.memory_space<vmem>>, vector<64x3xf32>
    %27 = vector.extract_strided_slice %26 {offsets = [0, 0], sizes = [64, 1], strides = [1, 1]} : vector<64x3xf32> to vector<64x1xf32>
    %28 = vector.broadcast %27 : vector<64x1xf32> to vector<64x128xf32>
    %29 = arith.addf %25, %28 : vector<64x128xf32>
    %cst_15 = arith.constant 0.000000e+00 : f32
    %30 = vector.broadcast %cst_15 : f32 to vector<64x128xf32>
    %31 = arith.cmpf ogt, %29, %30 : vector<64x128xf32>
    %cst_16 = arith.constant 0.000000e+00 : f32
    %32 = vector.broadcast %cst_16 : f32 to vector<64x128xf32>
    %33 = arith.minimumf %29, %32 : vector<64x128xf32>
    %34 = math.exp %33 : vector<64x128xf32>
    %cst_17 = arith.constant 1.000000e+00 : f32
    %35 = vector.broadcast %cst_17 : f32 to vector<64x128xf32>
    %36 = arith.subf %34, %35 : vector<64x128xf32>
    %37 = arith.select %31, %29, %36 : vector<64x128xi1>, vector<64x128xf32>
    %38 = vector.extract_strided_slice %26 {offsets = [0, 1], sizes = [64, 1], strides = [1, 1]} : vector<64x3xf32> to vector<64x1xf32>
    %39 = vector.broadcast %38 : vector<64x1xf32> to vector<64x128xf32>
    %40 = arith.mulf %37, %39 : vector<64x128xf32>
    %41 = vector.extract_strided_slice %26 {offsets = [0, 2], sizes = [64, 1], strides = [1, 1]} : vector<64x3xf32> to vector<64x1xf32>
    %42 = vector.broadcast %41 : vector<64x1xf32> to vector<64x128xf32>
    %43 = arith.addf %40, %42 : vector<64x128xf32>
    %c0_18 = arith.constant 0 : index
    %c0_19 = arith.constant 0 : index
    %44 = vector.load %arg11[%c0_18, %c0_19] : memref<64x64xbf16, #tpu.memory_space<vmem>>, vector<64x64xbf16>
    %45 = arith.truncf %43 : vector<64x128xf32> to vector<64x128xbf16>
    %cst_20 = arith.constant dense<0.000000e+00> : vector<64x128xf32>
    %46 = tpu.matmul %44, %45, %cst_20 {dimension_numbers = #tpu.dot_dimension_numbers<[1], [0], [0], [1], [0, 0, 1, 1], [], []>} : vector<64x64xbf16>, vector<64x128xbf16>, vector<64x128xf32> -> vector<64x128xf32>
    %c0_21 = arith.constant 0 : index
    %c0_22 = arith.constant 0 : index
    %47 = vector.load %arg12[%c0_21, %c0_22] : memref<64x3xf32, #tpu.memory_space<vmem>>, vector<64x3xf32>
    %48 = vector.extract_strided_slice %47 {offsets = [0, 0], sizes = [64, 1], strides = [1, 1]} : vector<64x3xf32> to vector<64x1xf32>
    %49 = vector.broadcast %48 : vector<64x1xf32> to vector<64x128xf32>
    %50 = arith.addf %46, %49 : vector<64x128xf32>
    %cst_23 = arith.constant 0.000000e+00 : f32
    %51 = vector.broadcast %cst_23 : f32 to vector<64x128xf32>
    %52 = arith.cmpf ogt, %50, %51 : vector<64x128xf32>
    %cst_24 = arith.constant 0.000000e+00 : f32
    %53 = vector.broadcast %cst_24 : f32 to vector<64x128xf32>
    %54 = arith.minimumf %50, %53 : vector<64x128xf32>
    %55 = math.exp %54 : vector<64x128xf32>
    %cst_25 = arith.constant 1.000000e+00 : f32
    %56 = vector.broadcast %cst_25 : f32 to vector<64x128xf32>
    %57 = arith.subf %55, %56 : vector<64x128xf32>
    %58 = arith.select %52, %50, %57 : vector<64x128xi1>, vector<64x128xf32>
    %59 = vector.extract_strided_slice %47 {offsets = [0, 1], sizes = [64, 1], strides = [1, 1]} : vector<64x3xf32> to vector<64x1xf32>
    %60 = vector.broadcast %59 : vector<64x1xf32> to vector<64x128xf32>
    %61 = arith.mulf %58, %60 : vector<64x128xf32>
    %62 = vector.extract_strided_slice %47 {offsets = [0, 2], sizes = [64, 1], strides = [1, 1]} : vector<64x3xf32> to vector<64x1xf32>
    %63 = vector.broadcast %62 : vector<64x1xf32> to vector<64x128xf32>
    %64 = arith.addf %61, %63 : vector<64x128xf32>
    %c0_26 = arith.constant 0 : index
    %c0_27 = arith.constant 0 : index
    %65 = vector.load %arg3[%c0_26, %c0_27] : memref<128x24xbf16, #tpu.memory_space<vmem>>, vector<128x24xbf16>
    %66 = arith.truncf %0 : vector<24x128xf32> to vector<24x128xbf16>
    %cst_28 = arith.constant dense<0.000000e+00> : vector<128x128xf32>
    %67 = tpu.matmul %65, %66, %cst_28 {dimension_numbers = #tpu.dot_dimension_numbers<[1], [0], [0], [1], [0, 0, 1, 1], [], []>} : vector<128x24xbf16>, vector<24x128xbf16>, vector<128x128xf32> -> vector<128x128xf32>
    %c0_29 = arith.constant 0 : index
    %c0_30 = arith.constant 0 : index
    %68 = vector.load %arg4[%c0_29, %c0_30] : memref<128x3xf32, #tpu.memory_space<vmem>>, vector<128x3xf32>
    %69 = vector.extract_strided_slice %68 {offsets = [0, 0], sizes = [128, 1], strides = [1, 1]} : vector<128x3xf32> to vector<128x1xf32>
    %70 = vector.broadcast %69 : vector<128x1xf32> to vector<128x128xf32>
    %71 = arith.addf %67, %70 : vector<128x128xf32>
    %cst_31 = arith.constant 0.000000e+00 : f32
    %72 = vector.broadcast %cst_31 : f32 to vector<128x128xf32>
    %73 = arith.cmpf ogt, %71, %72 : vector<128x128xf32>
    %cst_32 = arith.constant 0.000000e+00 : f32
    %74 = vector.broadcast %cst_32 : f32 to vector<128x128xf32>
    %75 = arith.minimumf %71, %74 : vector<128x128xf32>
    %76 = math.exp %75 : vector<128x128xf32>
    %cst_33 = arith.constant 1.000000e+00 : f32
    %77 = vector.broadcast %cst_33 : f32 to vector<128x128xf32>
    %78 = arith.subf %76, %77 : vector<128x128xf32>
    %79 = arith.select %73, %71, %78 : vector<128x128xi1>, vector<128x128xf32>
    %80 = vector.extract_strided_slice %68 {offsets = [0, 1], sizes = [128, 1], strides = [1, 1]} : vector<128x3xf32> to vector<128x1xf32>
    %81 = vector.broadcast %80 : vector<128x1xf32> to vector<128x128xf32>
    %82 = arith.mulf %79, %81 : vector<128x128xf32>
    %83 = vector.extract_strided_slice %68 {offsets = [0, 2], sizes = [128, 1], strides = [1, 1]} : vector<128x3xf32> to vector<128x1xf32>
    %84 = vector.broadcast %83 : vector<128x1xf32> to vector<128x128xf32>
    %85 = arith.addf %82, %84 : vector<128x128xf32>
    %c0_34 = arith.constant 0 : index
    %c0_35 = arith.constant 0 : index
    %86 = vector.load %arg5[%c0_34, %c0_35] : memref<128x128xbf16, #tpu.memory_space<vmem>>, vector<128x128xbf16>
    %87 = arith.truncf %85 : vector<128x128xf32> to vector<128x128xbf16>
    %cst_36 = arith.constant dense<0.000000e+00> : vector<128x128xf32>
    %88 = tpu.matmul %86, %87, %cst_36 {dimension_numbers = #tpu.dot_dimension_numbers<[1], [0], [0], [1], [0, 0, 1, 1], [], []>} : vector<128x128xbf16>, vector<128x128xbf16>, vector<128x128xf32> -> vector<128x128xf32>
    %c0_37 = arith.constant 0 : index
    %c0_38 = arith.constant 0 : index
    %89 = vector.load %arg6[%c0_37, %c0_38] : memref<128x3xf32, #tpu.memory_space<vmem>>, vector<128x3xf32>
    %90 = vector.extract_strided_slice %89 {offsets = [0, 0], sizes = [128, 1], strides = [1, 1]} : vector<128x3xf32> to vector<128x1xf32>
    %91 = vector.broadcast %90 : vector<128x1xf32> to vector<128x128xf32>
    %92 = arith.addf %88, %91 : vector<128x128xf32>
    %cst_39 = arith.constant 0.000000e+00 : f32
    %93 = vector.broadcast %cst_39 : f32 to vector<128x128xf32>
    %94 = arith.cmpf ogt, %92, %93 : vector<128x128xf32>
    %cst_40 = arith.constant 0.000000e+00 : f32
    %95 = vector.broadcast %cst_40 : f32 to vector<128x128xf32>
    %96 = arith.minimumf %92, %95 : vector<128x128xf32>
    %97 = math.exp %96 : vector<128x128xf32>
    %cst_41 = arith.constant 1.000000e+00 : f32
    %98 = vector.broadcast %cst_41 : f32 to vector<128x128xf32>
    %99 = arith.subf %97, %98 : vector<128x128xf32>
    %100 = arith.select %94, %92, %99 : vector<128x128xi1>, vector<128x128xf32>
    %101 = vector.extract_strided_slice %89 {offsets = [0, 1], sizes = [128, 1], strides = [1, 1]} : vector<128x3xf32> to vector<128x1xf32>
    %102 = vector.broadcast %101 : vector<128x1xf32> to vector<128x128xf32>
    %103 = arith.mulf %100, %102 : vector<128x128xf32>
    %104 = vector.extract_strided_slice %89 {offsets = [0, 2], sizes = [128, 1], strides = [1, 1]} : vector<128x3xf32> to vector<128x1xf32>
    %105 = vector.broadcast %104 : vector<128x1xf32> to vector<128x128xf32>
    %106 = arith.addf %103, %105 : vector<128x128xf32>
    %cst_42 = arith.constant 0.000000e+00 : f32
    %107 = vector.broadcast %cst_42 : f32 to vector<32x128xf32>
    %c0_43 = arith.constant 0 : index
    %c0_44 = arith.constant 0 : index
    %c0_45 = arith.constant 0 : index
    %108 = vector.load %arg13[%c0_43, %c0_44, %c0_45] : memref<1x32x64xbf16, #tpu.memory_space<vmem>>, vector<1x32x64xbf16>
    %109 = vector.shape_cast %108 : vector<1x32x64xbf16> to vector<32x64xbf16>
    %110 = arith.truncf %64 : vector<64x128xf32> to vector<64x128xbf16>
    %cst_46 = arith.constant dense<0.000000e+00> : vector<32x128xf32>
    %111 = tpu.matmul %109, %110, %cst_46 {dimension_numbers = #tpu.dot_dimension_numbers<[1], [0], [0], [1], [0, 0, 1, 1], [], []>} : vector<32x64xbf16>, vector<64x128xbf16>, vector<32x128xf32> -> vector<32x128xf32>
    %c0_47 = arith.constant 0 : index
    %c0_48 = arith.constant 0 : index
    %c0_49 = arith.constant 0 : index
    %112 = vector.load %arg14[%c0_47, %c0_48, %c0_49] : memref<1x128x64xbf16, #tpu.memory_space<vmem>>, vector<1x128x64xbf16>
    %113 = vector.shape_cast %112 : vector<1x128x64xbf16> to vector<128x64xbf16>
    %114 = arith.truncf %64 : vector<64x128xf32> to vector<64x128xbf16>
    %cst_50 = arith.constant dense<0.000000e+00> : vector<128x128xf32>
    %115 = tpu.matmul %113, %114, %cst_50 {dimension_numbers = #tpu.dot_dimension_numbers<[1], [0], [0], [1], [0, 0, 1, 1], [], []>} : vector<128x64xbf16>, vector<64x128xbf16>, vector<128x128xf32> -> vector<128x128xf32>
    %c0_51 = arith.constant 0 : index
    %c0_52 = arith.constant 0 : index
    %c0_53 = arith.constant 0 : index
    %116 = vector.load %arg15[%c0_51, %c0_52, %c0_53] : memref<1x32x32xbf16, #tpu.memory_space<vmem>>, vector<1x32x32xbf16>
    %117 = vector.shape_cast %116 : vector<1x32x32xbf16> to vector<32x32xbf16>
    %118 = arith.mulf %1, %111 : vector<32x128xf32>
    %119 = arith.truncf %118 : vector<32x128xf32> to vector<32x128xbf16>
    %cst_54 = arith.constant dense<0.000000e+00> : vector<32x128xf32>
    %120 = tpu.matmul %117, %119, %cst_54 {dimension_numbers = #tpu.dot_dimension_numbers<[1], [0], [0], [1], [0, 0, 1, 1], [], []>} : vector<32x32xbf16>, vector<32x128xbf16>, vector<32x128xf32> -> vector<32x128xf32>
    %121 = arith.addf %107, %120 : vector<32x128xf32>
    %c0_55 = arith.constant 0 : index
    %c0_56 = arith.constant 0 : index
    %c0_57 = arith.constant 0 : index
    %122 = vector.load %arg16[%c0_55, %c0_56, %c0_57] : memref<1x32x128xbf16, #tpu.memory_space<vmem>>, vector<1x32x128xbf16>
    %123 = vector.shape_cast %122 : vector<1x32x128xbf16> to vector<32x128xbf16>
    %124 = arith.mulf %106, %115 : vector<128x128xf32>
    %125 = arith.truncf %124 : vector<128x128xf32> to vector<128x128xbf16>
    %cst_58 = arith.constant dense<0.000000e+00> : vector<32x128xf32>
    %126 = tpu.matmul %123, %125, %cst_58 {dimension_numbers = #tpu.dot_dimension_numbers<[1], [0], [0], [1], [0, 0, 1, 1], [], []>} : vector<32x128xbf16>, vector<128x128xbf16>, vector<32x128xf32> -> vector<32x128xf32>
    %127 = arith.addf %121, %126 : vector<32x128xf32>
    %c0_59 = arith.constant 0 : index
    %c0_60 = arith.constant 0 : index
    %128 = vector.load %arg17[%c0_59, %c0_60] : memref<32x3xf32, #tpu.memory_space<vmem>>, vector<32x3xf32>
    %129 = vector.extract_strided_slice %128 {offsets = [0, 0], sizes = [32, 1], strides = [1, 1]} : vector<32x3xf32> to vector<32x1xf32>
    %130 = vector.broadcast %129 : vector<32x1xf32> to vector<32x128xf32>
    %131 = arith.addf %127, %130 : vector<32x128xf32>
    %cst_61 = arith.constant 0.000000e+00 : f32
    %132 = vector.broadcast %cst_61 : f32 to vector<32x128xf32>
    %133 = arith.cmpf ogt, %131, %132 : vector<32x128xf32>
    %cst_62 = arith.constant 0.000000e+00 : f32
    %134 = vector.broadcast %cst_62 : f32 to vector<32x128xf32>
    %135 = arith.minimumf %131, %134 : vector<32x128xf32>
    %136 = math.exp %135 : vector<32x128xf32>
    %cst_63 = arith.constant 1.000000e+00 : f32
    %137 = vector.broadcast %cst_63 : f32 to vector<32x128xf32>
    %138 = arith.subf %136, %137 : vector<32x128xf32>
    %139 = arith.select %133, %131, %138 : vector<32x128xi1>, vector<32x128xf32>
    %140 = vector.extract_strided_slice %128 {offsets = [0, 1], sizes = [32, 1], strides = [1, 1]} : vector<32x3xf32> to vector<32x1xf32>
    %141 = vector.broadcast %140 : vector<32x1xf32> to vector<32x128xf32>
    %142 = arith.mulf %139, %141 : vector<32x128xf32>
    %143 = vector.extract_strided_slice %128 {offsets = [0, 2], sizes = [32, 1], strides = [1, 1]} : vector<32x3xf32> to vector<32x1xf32>
    %144 = vector.broadcast %143 : vector<32x1xf32> to vector<32x128xf32>
    %145 = arith.addf %142, %144 : vector<32x128xf32>
    %c0_64 = arith.constant 0 : index
    %c0_65 = arith.constant 0 : index
    %146 = vector.load %arg18[%c0_64, %c0_65] : memref<32x128xf32, #tpu.memory_space<vmem>>, vector<32x128xf32>
    tpu.vector_store %arg18[%c0_64, %c0_65], %145 {strides = array<i32>} : memref<32x128xf32, #tpu.memory_space<vmem>>, vector<32x128xf32>,
    return
  }
  func.func @transform_0(%arg0: i32) -> (i32, i32) {
    %c0_i32 = arith.constant 0 : i32
    %c0_i32_0 = arith.constant 0 : i32
    return %c0_i32, %arg0 : i32, i32
  }
  func.func @transform_1(%arg0: i32) -> (i32, i32) {
    %c0_i32 = arith.constant 0 : i32
    %c0_i32_0 = arith.constant 0 : i32
    return %c0_i32, %arg0 : i32, i32
  }
  func.func @transform_2(%arg0: i32) -> (i32, i32) {
    %c0_i32 = arith.constant 0 : i32
    %c0_i32_0 = arith.constant 0 : i32
    %c0_i32_1 = arith.constant 0 : i32
    return %c0_i32, %c0_i32_0 : i32, i32
  }
  func.func @transform_3(%arg0: i32) -> (i32, i32) {
    %c0_i32 = arith.constant 0 : i32
    %c0_i32_0 = arith.constant 0 : i32
    %c0_i32_1 = arith.constant 0 : i32
    return %c0_i32, %c0_i32_0 : i32, i32
  }
  func.func @transform_4(%arg0: i32) -> (i32, i32) {
    %c0_i32 = arith.constant 0 : i32
    %c0_i32_0 = arith.constant 0 : i32
    %c0_i32_1 = arith.constant 0 : i32
    return %c0_i32, %c0_i32_0 : i32, i32
  }
  func.func @transform_5(%arg0: i32) -> (i32, i32) {
    %c0_i32 = arith.constant 0 : i32
    %c0_i32_0 = arith.constant 0 : i32
    %c0_i32_1 = arith.constant 0 : i32
    return %c0_i32, %c0_i32_0 : i32, i32
  }
  func.func @transform_6(%arg0: i32) -> (i32, i32) {
    %c0_i32 = arith.constant 0 : i32
    %c0_i32_0 = arith.constant 0 : i32
    %c0_i32_1 = arith.constant 0 : i32
    return %c0_i32, %c0_i32_0 : i32, i32
  }
  func.func @transform_7(%arg0: i32) -> (i32, i32) {
    %c0_i32 = arith.constant 0 : i32
    %c0_i32_0 = arith.constant 0 : i32
    %c0_i32_1 = arith.constant 0 : i32
    return %c0_i32, %c0_i32_0 : i32, i32
  }
  func.func @transform_8(%arg0: i32) -> (i32, i32) {
    %c0_i32 = arith.constant 0 : i32
    %c0_i32_0 = arith.constant 0 : i32
    %c0_i32_1 = arith.constant 0 : i32
    return %c0_i32, %c0_i32_0 : i32, i32
  }
  func.func @transform_9(%arg0: i32) -> (i32, i32) {
    %c0_i32 = arith.constant 0 : i32
    %c0_i32_0 = arith.constant 0 : i32
    %c0_i32_1 = arith.constant 0 : i32
    return %c0_i32, %c0_i32_0 : i32, i32
  }
  func.func @transform_10(%arg0: i32) -> (i32, i32) {
    %c0_i32 = arith.constant 0 : i32
    %c0_i32_0 = arith.constant 0 : i32
    %c0_i32_1 = arith.constant 0 : i32
    return %c0_i32, %c0_i32_0 : i32, i32
  }
  func.func @transform_11(%arg0: i32) -> (i32, i32) {
    %c0_i32 = arith.constant 0 : i32
    %c0_i32_0 = arith.constant 0 : i32
    %c0_i32_1 = arith.constant 0 : i32
    return %c0_i32, %c0_i32_0 : i32, i32
  }
  func.func @transform_12(%arg0: i32) -> (i32, i32, i32) {
    %c0_i32 = arith.constant 0 : i32
    %c0_i32_0 = arith.constant 0 : i32
    %c0_i32_1 = arith.constant 0 : i32
    %c0_i32_2 = arith.constant 0 : i32
    return %c0_i32, %c0_i32_0, %c0_i32_1 : i32, i32, i32
  }
  func.func @transform_13(%arg0: i32) -> (i32, i32, i32) {
    %c0_i32 = arith.constant 0 : i32
    %c0_i32_0 = arith.constant 0 : i32
    %c0_i32_1 = arith.constant 0 : i32
    %c0_i32_2 = arith.constant 0 : i32
    return %c0_i32, %c0_i32_0, %c0_i32_1 : i32, i32, i32
  }
  func.func @transform_14(%arg0: i32) -> (i32, i32, i32) {
    %c0_i32 = arith.constant 0 : i32
    %c0_i32_0 = arith.constant 0 : i32
    %c0_i32_1 = arith.constant 0 : i32
    %c0_i32_2 = arith.constant 0 : i32
    return %c0_i32, %c0_i32_0, %c0_i32_1 : i32, i32, i32
  }
  func.func @transform_15(%arg0: i32) -> (i32, i32, i32) {
    %c0_i32 = arith.constant 0 : i32
    %c0_i32_0 = arith.constant 0 : i32
    %c0_i32_1 = arith.constant 0 : i32
    %c0_i32_2 = arith.constant 0 : i32
    return %c0_i32, %c0_i32_0, %c0_i32_1 : i32, i32, i32
  }
  func.func @transform_16(%arg0: i32) -> (i32, i32) {
    %c0_i32 = arith.constant 0 : i32
    %c0_i32_0 = arith.constant 0 : i32
    %c0_i32_1 = arith.constant 0 : i32
    return %c0_i32, %c0_i32_0 : i32, i32
  }
  func.func @transform_17(%arg0: i32) -> (i32, i32) {
    %c0_i32 = arith.constant 0 : i32
    %c0_i32_0 = arith.constant 0 : i32
    return %c0_i32, %arg0 : i32, i32
  }
}

</mosaic_0001>

<llo_original>
// kernel: xconv_forward.1
$region0: #{xconv_forward.1}
  #allocation0 [shape = 'u32[]', space=smem, size = 0x4, offset = 0x4, fixed_abs, tag = 'smem constant byte address 0x4 - core index']
  #allocation1 [shape = 'u32[144,128]{1,0:T(1,128)}', space=vmem, size = 0x12000, scoped, tag = 'internal scratch']
  %s0 = inlined_call_operand.vmem [shape: f32[24,128], index: 0, kind: input, shape index: {}]
  %s1 = inlined_call_operand.vmem [shape: f32[32,128], index: 1, kind: input, shape index: {}]
  %s2 = inlined_call_operand.vmem [shape: bf16[128,24], index: 2, kind: input, shape index: {}]
  %s3 = inlined_call_operand.vmem [shape: f32[128,3], index: 3, kind: input, shape index: {}]
  %s4 = inlined_call_operand.vmem [shape: bf16[128,128], index: 4, kind: input, shape index: {}]
  %s5 = inlined_call_operand.vmem [shape: f32[128,3], index: 5, kind: input, shape index: {}]
  %s6 = inlined_call_operand.vmem [shape: bf16[64,24], index: 6, kind: input, shape index: {}]
  %s7 = inlined_call_operand.vmem [shape: f32[64,3], index: 7, kind: input, shape index: {}]
  %s8 = inlined_call_operand.vmem [shape: bf16[64,64], index: 8, kind: input, shape index: {}]
  %s9 = inlined_call_operand.vmem [shape: f32[64,3], index: 9, kind: input, shape index: {}]
  %s10 = inlined_call_operand.vmem [shape: bf16[64,64], index: 10, kind: input, shape index: {}]
  %s11 = inlined_call_operand.vmem [shape: f32[64,3], index: 11, kind: input, shape index: {}]
  %s12 = inlined_call_operand.vmem [shape: bf16[1,32,64], index: 12, kind: input, shape index: {}]
  %s13 = inlined_call_operand.vmem [shape: bf16[1,128,64], index: 13, kind: input, shape index: {}]
  %s14 = inlined_call_operand.vmem [shape: bf16[1,32,32], index: 14, kind: input, shape index: {}]
  %s15 = inlined_call_operand.vmem [shape: bf16[1,32,128], index: 15, kind: input, shape index: {}]
  %s16 = inlined_call_operand.vmem [shape: f32[32,3], index: 16, kind: input, shape index: {}]
  %s17 = inlined_call_operand.vmem [shape: f32[32,128], index: 17, kind: output, shape index: {}]
  %s18 = sld [smem:[#allocation0]]
  $region78: #{xconv_forward.1} parent=0
    _
  %s20 = ssub.s32 1, %s18
  %s21 = scalar_select 0, %s20, %s18
  // Predicated region
  $region2: #{xconv_forward.1} parent=0 // pred_check
    _
  $region3: #{xconv_forward.1} parent=0 // pred_check_branch
    %23 = sbr.rel (0) target = $region5
  $region4: #{xconv_forward.1} parent=0 // pred_region
    _
  $region5: #{xconv_forward.1} parent=0 // pred_fallthru
    _
  // Predicated region
  $region6: #{xconv_forward.1} parent=0 // pred_check
    _
  $region7: #{xconv_forward.1} parent=0 // pred_check_branch
    %25 = sbr.rel (0) target = $region9
  $region8: #{xconv_forward.1} parent=0 // pred_region
    _
  $region9: #{xconv_forward.1} parent=0 // pred_fallthru
    _
  // Predicated region
  $region10: #{xconv_forward.1} parent=0 // pred_check
    _
  $region11: #{xconv_forward.1} parent=0 // pred_check_branch
    %27 = sbr.rel (0) target = $region13
  $region12: #{xconv_forward.1} parent=0 // pred_region
    _
  $region13: #{xconv_forward.1} parent=0 // pred_fallthru
    _
  // Predicated region
  $region14: #{xconv_forward.1} parent=0 // pred_check
    _
  $region15: #{xconv_forward.1} parent=0 // pred_check_branch
    %29 = sbr.rel (0) target = $region17
  $region16: #{xconv_forward.1} parent=0 // pred_region
    _
  $region17: #{xconv_forward.1} parent=0 // pred_fallthru
    _
  // Predicated region
  $region18: #{xconv_forward.1} parent=0 // pred_check
    _
  $region19: #{xconv_forward.1} parent=0 // pred_check_branch
    %31 = sbr.rel (0) target = $region21
  $region20: #{xconv_forward.1} parent=0 // pred_region
    _
  $region21: #{xconv_forward.1} parent=0 // pred_fallthru
    _
  // Predicated region
  $region22: #{xconv_forward.1} parent=0 // pred_check
    _
  $region23: #{xconv_forward.1} parent=0 // pred_check_branch
    %33 = sbr.rel (0) target = $region25
  $region24: #{xconv_forward.1} parent=0 // pred_region
    _
  $region25: #{xconv_forward.1} parent=0 // pred_fallthru
    _
  // Predicated region
  $region26: #{xconv_forward.1} parent=0 // pred_check
    _
  $region27: #{xconv_forward.1} parent=0 // pred_check_branch
    %35 = sbr.rel (0) target = $region29
  $region28: #{xconv_forward.1} parent=0 // pred_region
    _
  $region29: #{xconv_forward.1} parent=0 // pred_fallthru
    _
  // Predicated region
  $region30: #{xconv_forward.1} parent=0 // pred_check
    _
  $region31: #{xconv_forward.1} parent=0 // pred_check_branch
    %37 = sbr.rel (0) target = $region33
  $region32: #{xconv_forward.1} parent=0 // pred_region
    _
  $region33: #{xconv_forward.1} parent=0 // pred_fallthru
    _
  // Predicated region
  $region34: #{xconv_forward.1} parent=0 // pred_check
    _
  $region35: #{xconv_forward.1} parent=0 // pred_check_branch
    %39 = sbr.rel (0) target = $region37
  $region36: #{xconv_forward.1} parent=0 // pred_region
    _
  $region37: #{xconv_forward.1} parent=0 // pred_fallthru
    _
  // Predicated region
  $region38: #{xconv_forward.1} parent=0 // pred_check
    _
  $region39: #{xconv_forward.1} parent=0 // pred_check_branch
    %41 = sbr.rel (0) target = $region41
  $region40: #{xconv_forward.1} parent=0 // pred_region
    _
  $region41: #{xconv_forward.1} parent=0 // pred_fallthru
    _
  // Predicated region
  $region42: #{xconv_forward.1} parent=0 // pred_check
    _
  $region43: #{xconv_forward.1} parent=0 // pred_check_branch
    %43 = sbr.rel (0) target = $region45
  $region44: #{xconv_forward.1} parent=0 // pred_region
    _
  $region45: #{xconv_forward.1} parent=0 // pred_fallthru
    _
  // Predicated region
  $region46: #{xconv_forward.1} parent=0 // pred_check
    _
  $region47: #{xconv_forward.1} parent=0 // pred_check_branch
    %45 = sbr.rel (0) target = $region49
  $region48: #{xconv_forward.1} parent=0 // pred_region
    _
  $region49: #{xconv_forward.1} parent=0 // pred_fallthru
    _
  // Predicated region
  $region50: #{xconv_forward.1} parent=0 // pred_check
    _
  $region51: #{xconv_forward.1} parent=0 // pred_check_branch
    %47 = sbr.rel (0) target = $region53
  $region52: #{xconv_forward.1} parent=0 // pred_region
    _
  $region53: #{xconv_forward.1} parent=0 // pred_fallthru
    _
  // Predicated region
  $region54: #{xconv_forward.1} parent=0 // pred_check
    _
  $region55: #{xconv_forward.1} parent=0 // pred_check_branch
    %49 = sbr.rel (0) target = $region57
  $region56: #{xconv_forward.1} parent=0 // pred_region
    _
  $region57: #{xconv_forward.1} parent=0 // pred_fallthru
    _
  // Predicated region
  $region58: #{xconv_forward.1} parent=0 // pred_check
    _
  $region59: #{xconv_forward.1} parent=0 // pred_check_branch
    %51 = sbr.rel (0) target = $region61
  $region60: #{xconv_forward.1} parent=0 // pred_region
    _
  $region61: #{xconv_forward.1} parent=0 // pred_fallthru
    _
  // Predicated region
  $region62: #{xconv_forward.1} parent=0 // pred_check
    _
  $region63: #{xconv_forward.1} parent=0 // pred_check_branch
    %53 = sbr.rel (0) target = $region65
  $region64: #{xconv_forward.1} parent=0 // pred_region
    _
  $region65: #{xconv_forward.1} parent=0 // pred_fallthru
    _
  // Predicated region
  $region66: #{xconv_forward.1} parent=0 // pred_check
    _
  $region67: #{xconv_forward.1} parent=0 // pred_check_branch
    %55 = sbr.rel (0) target = $region69
  $region68: #{xconv_forward.1} parent=0 // pred_region
    _
  $region69: #{xconv_forward.1} parent=0 // pred_fallthru
    _
  %v57 = vld [vmem:[%s0] sm:$0xff]
  %v58 = vld [vmem:[%s0 + $0x8] sm:$0xff]
  %v59 = vld [vmem:[%s0 + $0x10] sm:$0xff]
  %v60 = vld [vmem:[%s1] sm:$0xff]
  %v61 = vld [vmem:[%s1 + $0x8] sm:$0xff]
  %v62 = vld [vmem:[%s1 + $0x10] sm:$0xff]
  %v63 = vld [vmem:[%s1 + $0x18] sm:$0xff]
  %v64 = vld [vmem:[%s6] sm:$0xf]
  %v65 = vld [vmem:[%s6 + $0x4] sm:$0xf]
  %v66 = vld [vmem:[%s6 + $0x8] sm:$0xf]
  %v67 = vld [vmem:[%s6 + $0xc] sm:$0xf]
  %v68 = vld [vmem:[%s6 + $0x10] sm:$0xf]
  %v69 = vld [vmem:[%s6 + $0x14] sm:$0xf]
  %v70 = vld [vmem:[%s6 + $0x18] sm:$0xf]
  %v71 = vld [vmem:[%s6 + $0x1c] sm:$0xf]
  %v72 = vpack.c.bf16 %v58, %v57
  %v73 = vpack.c.bf16 %v59, %v59
  %v74 = vld [vmem:[%s7] sm:$0xff]
  %v75 = vld [vmem:[%s7 + $0x8] sm:$0xff]
  %v76 = vld [vmem:[%s7 + $0x10] sm:$0xff]
  %v77 = vld [vmem:[%s7 + $0x18] sm:$0xff]
  %v78 = vld [vmem:[%s7 + $0x20] sm:$0xff]
  %v79 = vld [vmem:[%s7 + $0x28] sm:$0xff]
  %v80 = vld [vmem:[%s7 + $0x30] sm:$0xff]
  %v81 = vld [vmem:[%s7 + $0x38] sm:$0xff]
  %83 = vset.pattern.permute.xlu0 0
  %84 = vperm.xlu0 %83, %v74
  %v85 = vpop.permute.xlu0 %84
  %88 = vset.pattern.permute.xlu0 0
  %89 = vperm.xlu0 %88, %v75
  %v90 = vpop.permute.xlu0 %89
  %93 = vset.pattern.permute.xlu0 0
  %94 = vperm.xlu0 %93, %v76
  %v95 = vpop.permute.xlu0 %94
  %98 = vset.pattern.permute.xlu0 0
  %99 = vperm.xlu0 %98, %v77
  %v100 = vpop.permute.xlu0 %99
  %103 = vset.pattern.permute.xlu0 0
  %104 = vperm.xlu0 %103, %v78
  %v105 = vpop.permute.xlu0 %104
  %108 = vset.pattern.permute.xlu0 0
  %109 = vperm.xlu0 %108, %v79
  %v110 = vpop.permute.xlu0 %109
  %113 = vset.pattern.permute.xlu0 0
  %114 = vperm.xlu0 %113, %v80
  %v115 = vpop.permute.xlu0 %114
  %118 = vset.pattern.permute.xlu0 0
  %119 = vperm.xlu0 %118, %v81
  %v120 = vpop.permute.xlu0 %119
  %v130 = vunpack.c.l.b16 %v64
  %v131 = vunpack.c.l.b16 %v65
  %v132 = vunpack.c.l.b16 %v66
  %v133 = vunpack.c.l.b16 %v67
  %v134 = vunpack.c.l.b16 %v68
  %v135 = vunpack.c.l.b16 %v69
  %v136 = vunpack.c.l.b16 %v70
  %v137 = vunpack.c.l.b16 %v71
  %v138 = vpack.c.b16 %v131, %v130
  %v139 = vpack.c.b16 %v133, %v132
  %v140 = vpack.c.b16 %v135, %v134
  %v141 = vpack.c.b16 %v137, %v136
  %vm142 = vcmask 195584
  %v144 = vsel %vm142, %v138, 0
  %v147 = vsel %vm142, %v139, 0
  %v150 = vsel %vm142, %v140, 0
  %v153 = vsel %vm142, %v141, 0
  %vm155 = vcmask 1043456
  %v157 = vsel %vm155, %v73, 0
  %159 = vmatprep.subr.bf16.mxu0 0
  %160 = vmatpush1.bf16.msra.mxu0 %v72
  %161 = vmatprep.subr.bf16.mxu0 0
  %162 = vmatpush1.bf16.msra.mxu0 %v157
  %163 = vmatprep.subr.bf16.mxu0 0
  %164 = vmatpush1.bf16.msra.mxu0 0
  %165 = vmatprep.subr.bf16.mxu0 0
  %166 = vmatpush1.bf16.msra.mxu0 0
  %167 = vmatprep.subr.bf16.mxu0 0
  %168 = vmatpush1.bf16.msra.mxu0 0
  %169 = vmatprep.subr.bf16.mxu0 0
  %170 = vmatpush1.bf16.msra.mxu0 0
  %171 = vmatprep.subr.bf16.mxu0 0
  %172 = vmatpush1.bf16.msra.mxu0 0
  %173 = vmatprep.subr.bf16.mxu0 0
  %174 = vmatpush1.bf16.msra.mxu0 0
  %175 = vmatprep.subr.bf16.mxu0 0
  %176 = vmatpush1.bf16.msra.mxu0 0
  %177 = vmatprep.subr.bf16.mxu0 0
  %178 = vmatpush1.bf16.msra.mxu0 0
  %179 = vmatprep.subr.bf16.mxu0 0
  %180 = vmatpush1.bf16.msra.mxu0 0
  %181 = vmatprep.subr.bf16.mxu0 0
  %182 = vmatpush1.bf16.msra.mxu0 0
  %183 = vmatprep.subr.bf16.mxu0 0
  %184 = vmatpush1.bf16.msra.mxu0 0
  %185 = vmatprep.subr.bf16.mxu0 0
  %186 = vmatpush1.bf16.msra.mxu0 0
  %187 = vmatprep.subr.bf16.mxu0 0
  %188 = vmatpush1.bf16.msra.mxu0 0
  %189 = vmatprep.subr.bf16.mxu0 0
  %190 = vmatpush1.bf16.msra.mxu0 0
  %191 = vmatprep.mubr.bf16.mxu0 0
  %192 = vmatmul.mubr.bf16.gmra.mrb[0].mxu0 %v144
  %v193 = vpop.f32.mrb[0].mxu0
  %v194 = vadd.f32 %v85, %v193
  %v195 = vpop.f32.mrb[0].mxu0
  %v196 = vpop.f32.mrb[0].mxu0
  %v197 = vadd.f32 %v90, %v196
  %v198 = vpop.f32.mrb[0].mxu0
  %199 = vmatprep.mubr.bf16.mxu0 0
  %200 = vmatmul.mubr.bf16.gmra.mrb[0].mxu0 %v147
  %v201 = vpop.f32.mrb[0].mxu0
  %v202 = vadd.f32 %v95, %v201
  %v203 = vpop.f32.mrb[0].mxu0
  %v204 = vpop.f32.mrb[0].mxu0
  %v205 = vadd.f32 %v100, %v204
  %v206 = vpop.f32.mrb[0].mxu0
  %207 = vmatprep.mubr.bf16.mxu0 0
  %208 = vmatmul.mubr.bf16.gmra.mrb[0].mxu0 %v150
  %v209 = vpop.f32.mrb[0].mxu0
  %v210 = vadd.f32 %v105, %v209
  %v211 = vpop.f32.mrb[0].mxu0
  %v212 = vpop.f32.mrb[0].mxu0
  %v213 = vadd.f32 %v110, %v212
  %v214 = vpop.f32.mrb[0].mxu0
  %215 = vmatprep.mubr.bf16.mxu0 0
  %216 = vmatmul.mubr.bf16.gmra.mrb[0].mxu0 %v153
  %v217 = vpop.f32.mrb[0].mxu0
  %v218 = vadd.f32 %v115, %v217
  %v219 = vpop.f32.mrb[0].mxu0
  %v220 = vpop.f32.mrb[0].mxu0
  %v221 = vadd.f32 %v120, %v220
  %v222 = vpop.f32.mrb[0].mxu0
  %223 = vdwg.mxu0
  %vm224 = vcmp.gt.f32.partialorder %v194, 0.0
  %vm225 = vcmp.gt.f32.partialorder %v197, 0.0
  %vm226 = vcmp.gt.f32.partialorder %v202, 0.0
  %vm227 = vcmp.gt.f32.partialorder %v205, 0.0
  %vm228 = vcmp.gt.f32.partialorder %v210, 0.0
  %vm229 = vcmp.gt.f32.partialorder %v213, 0.0
  %vm230 = vcmp.gt.f32.partialorder %v218, 0.0
  %vm231 = vcmp.gt.f32.partialorder %v221, 0.0
  %v232 = vmin.f32 %v194, 0.0
  %v233 = vmin.f32 %v197, 0.0
  %v234 = vmin.f32 %v202, 0.0
  %v235 = vmin.f32 %v205, 0.0
  %v236 = vmin.f32 %v210, 0.0
  %v237 = vmin.f32 %v213, 0.0
  %v238 = vmin.f32 %v218, 0.0
  %v239 = vmin.f32 %v221, 0.0
  %v240 = vmul.f32 %v232, 1.442695
  %v241 = vpow.pop %v240
  %v242 = vmul.f32 %v233, 1.442695
  %v243 = vpow.pop %v242
  %v244 = vmul.f32 %v234, 1.442695
  %v245 = vpow.pop %v244
  %v246 = vmul.f32 %v235, 1.442695
  %v247 = vpow.pop %v246
  %v248 = vmul.f32 %v236, 1.442695
  %v249 = vpow.pop %v248
  %v250 = vmul.f32 %v237, 1.442695
  %v251 = vpow.pop %v250
  %v252 = vmul.f32 %v238, 1.442695
  %v253 = vpow.pop %v252
  %v254 = vmul.f32 %v239, 1.442695
  %v255 = vpow.pop %v254
  %v256 = vsub.f32 %v241, 1.0
  %v257 = vsub.f32 %v243, 1.0
  %v258 = vsub.f32 %v245, 1.0
  %v259 = vsub.f32 %v247, 1.0
  %v260 = vsub.f32 %v249, 1.0
  %v261 = vsub.f32 %v251, 1.0
  %v262 = vsub.f32 %v253, 1.0
  %v263 = vsub.f32 %v255, 1.0
  %v264 = vsel %vm224, %v194, %v256
  %v265 = vsel %vm225, %v197, %v257
  %v266 = vsel %vm226, %v202, %v258
  %v267 = vsel %vm227, %v205, %v259
  %v268 = vsel %vm228, %v210, %v260
  %v269 = vsel %vm229, %v213, %v261
  %v270 = vsel %vm230, %v218, %v262
  %v271 = vsel %vm231, %v221, %v263
  %272 = vset.pattern.permute.xlu0 1
  %273 = vperm.xlu0 %272, %v74
  %v274 = vpop.permute.xlu0 %273
  %276 = vset.pattern.permute.xlu0 1
  %277 = vperm.xlu0 %276, %v75
  %v278 = vpop.permute.xlu0 %277
  %280 = vset.pattern.permute.xlu0 1
  %281 = vperm.xlu0 %280, %v76
  %v282 = vpop.permute.xlu0 %281
  %284 = vset.pattern.permute.xlu0 1
  %285 = vperm.xlu0 %284, %v77
  %v286 = vpop.permute.xlu0 %285
  %288 = vset.pattern.permute.xlu0 1
  %289 = vperm.xlu0 %288, %v78
  %v290 = vpop.permute.xlu0 %289
  %292 = vset.pattern.permute.xlu0 1
  %293 = vperm.xlu0 %292, %v79
  %v294 = vpop.permute.xlu0 %293
  %296 = vset.pattern.permute.xlu0 1
  %297 = vperm.xlu0 %296, %v80
  %v298 = vpop.permute.xlu0 %297
  %300 = vset.pattern.permute.xlu0 1
  %301 = vperm.xlu0 %300, %v81
  %v302 = vpop.permute.xlu0 %301
  %v304 = vmul.f32 %v264, %v274
  %v305 = vmul.f32 %v265, %v278
  %v306 = vmul.f32 %v266, %v282
  %v307 = vmul.f32 %v267, %v286
  %v308 = vmul.f32 %v268, %v290
  %v309 = vmul.f32 %v269, %v294
  %v310 = vmul.f32 %v270, %v298
  %v311 = vmul.f32 %v271, %v302
  %312 = vset.pattern.permute.xlu0 2
  %313 = vperm.xlu0 %312, %v74
  %v314 = vpop.permute.xlu0 %313
  %316 = vset.pattern.permute.xlu0 2
  %317 = vperm.xlu0 %316, %v75
  %v318 = vpop.permute.xlu0 %317
  %320 = vset.pattern.permute.xlu0 2
  %321 = vperm.xlu0 %320, %v76
  %v322 = vpop.permute.xlu0 %321
  %324 = vset.pattern.permute.xlu0 2
  %325 = vperm.xlu0 %324, %v77
  %v326 = vpop.permute.xlu0 %325
  %328 = vset.pattern.permute.xlu0 2
  %329 = vperm.xlu0 %328, %v78
  %v330 = vpop.permute.xlu0 %329
  %332 = vset.pattern.permute.xlu0 2
  %333 = vperm.xlu0 %332, %v79
  %v334 = vpop.permute.xlu0 %333
  %336 = vset.pattern.permute.xlu0 2
  %337 = vperm.xlu0 %336, %v80
  %v338 = vpop.permute.xlu0 %337
  %340 = vset.pattern.permute.xlu0 2
  %341 = vperm.xlu0 %340, %v81
  %v342 = vpop.permute.xlu0 %341
  %v344 = vadd.f32 %v304, %v314
  %v345 = vadd.f32 %v305, %v318
  %v346 = vadd.f32 %v306, %v322
  %v347 = vadd.f32 %v307, %v326
  %v348 = vadd.f32 %v308, %v330
  %v349 = vadd.f32 %v309, %v334
  %v350 = vadd.f32 %v310, %v338
  %v351 = vadd.f32 %v311, %v342
  %v352 = vld [vmem:[%s8] sm:$0xf]
  %v353 = vld [vmem:[%s8 + $0x4] sm:$0xf]
  %v354 = vld [vmem:[%s8 + $0x8] sm:$0xf]
  %v355 = vld [vmem:[%s8 + $0xc] sm:$0xf]
  %v356 = vld [vmem:[%s8 + $0x10] sm:$0xf]
  %v357 = vld [vmem:[%s8 + $0x14] sm:$0xf]
  %v358 = vld [vmem:[%s8 + $0x18] sm:$0xf]
  %v359 = vld [vmem:[%s8 + $0x1c] sm:$0xf]
  %v360 = vpack.c.bf16 %v345, %v344
  %v361 = vpack.c.bf16 %v347, %v346
  %v362 = vpack.c.bf16 %v349, %v348
  %v363 = vpack.c.bf16 %v351, %v350
  %v364 = vld [vmem:[%s9] sm:$0xff]
  %v365 = vld [vmem:[%s9 + $0x8] sm:$0xff]
  %v366 = vld [vmem:[%s9 + $0x10] sm:$0xff]
  %v367 = vld [vmem:[%s9 + $0x18] sm:$0xff]
  %v368 = vld [vmem:[%s9 + $0x20] sm:$0xff]
  %v369 = vld [vmem:[%s9 + $0x28] sm:$0xff]
  %v370 = vld [vmem:[%s9 + $0x30] sm:$0xff]
  %v371 = vld [vmem:[%s9 + $0x38] sm:$0xff]
  %373 = vset.pattern.permute.xlu0 0
  %374 = vperm.xlu0 %373, %v364
  %v375 = vpop.permute.xlu0 %374
  %378 = vset.pattern.permute.xlu0 0
  %379 = vperm.xlu0 %378, %v365
  %v380 = vpop.permute.xlu0 %379
  %383 = vset.pattern.permute.xlu0 0
  %384 = vperm.xlu0 %383, %v366
  %v385 = vpop.permute.xlu0 %384
  %388 = vset.pattern.permute.xlu0 0
  %389 = vperm.xlu0 %388, %v367
  %v390 = vpop.permute.xlu0 %389
  %393 = vset.pattern.permute.xlu0 0
  %394 = vperm.xlu0 %393, %v368
  %v395 = vpop.permute.xlu0 %394
  %398 = vset.pattern.permute.xlu0 0
  %399 = vperm.xlu0 %398, %v369
  %v400 = vpop.permute.xlu0 %399
  %403 = vset.pattern.permute.xlu0 0
  %404 = vperm.xlu0 %403, %v370
  %v405 = vpop.permute.xlu0 %404
  %408 = vset.pattern.permute.xlu0 0
  %409 = vperm.xlu0 %408, %v371
  %v410 = vpop.permute.xlu0 %409
  %v420 = vunpack.c.l.b16 %v352
  %v421 = vunpack.c.l.b16 %v353
  %v422 = vunpack.c.l.b16 %v354
  %v423 = vunpack.c.l.b16 %v355
  %v424 = vunpack.c.l.b16 %v356
  %v425 = vunpack.c.l.b16 %v357
  %v426 = vunpack.c.l.b16 %v358
  %v427 = vunpack.c.l.b16 %v359
  %v428 = vpack.c.b16 %v421, %v420
  %v429 = vpack.c.b16 %v423, %v422
  %v430 = vpack.c.b16 %v425, %v424
  %v431 = vpack.c.b16 %v427, %v426
  %vm432 = vcmask 523264
  %v434 = vsel %vm432, %v428, 0
  %v437 = vsel %vm432, %v429, 0
  %v440 = vsel %vm432, %v430, 0
  %v443 = vsel %vm432, %v431, 0
  %445 = vmatprep.subr.bf16.mxu0 0
  %446 = vmatpush1.bf16.msra.mxu0 %v360
  %447 = vmatprep.subr.bf16.mxu0 0
  %448 = vmatpush1.bf16.msra.mxu0 %v361
  %449 = vmatprep.subr.bf16.mxu0 0
  %450 = vmatpush1.bf16.msra.mxu0 %v362
  %451 = vmatprep.subr.bf16.mxu0 0
  %452 = vmatpush1.bf16.msra.mxu0 %v363
  %453 = vmatprep.subr.bf16.mxu0 0
  %454 = vmatpush1.bf16.msra.mxu0 0
  %455 = vmatprep.subr.bf16.mxu0 0
  %456 = vmatpush1.bf16.msra.mxu0 0
  %457 = vmatprep.subr.bf16.mxu0 0
  %458 = vmatpush1.bf16.msra.mxu0 0
  %459 = vmatprep.subr.bf16.mxu0 0
  %460 = vmatpush1.bf16.msra.mxu0 0
  %461 = vmatprep.subr.bf16.mxu0 0
  %462 = vmatpush1.bf16.msra.mxu0 0
  %463 = vmatprep.subr.bf16.mxu0 0
  %464 = vmatpush1.bf16.msra.mxu0 0
  %465 = vmatprep.subr.bf16.mxu0 0
  %466 = vmatpush1.bf16.msra.mxu0 0
  %467 = vmatprep.subr.bf16.mxu0 0
  %468 = vmatpush1.bf16.msra.mxu0 0
  %469 = vmatprep.subr.bf16.mxu0 0
  %470 = vmatpush1.bf16.msra.mxu0 0
  %471 = vmatprep.subr.bf16.mxu0 0
  %472 = vmatpush1.bf16.msra.mxu0 0
  %473 = vmatprep.subr.bf16.mxu0 0
  %474 = vmatpush1.bf16.msra.mxu0 0
  %475 = vmatprep.subr.bf16.mxu0 0
  %476 = vmatpush1.bf16.msra.mxu0 0
  %477 = vmatprep.mubr.bf16.mxu0 0
  %478 = vmatmul.mubr.bf16.gmra.mrb[0].mxu0 %v434
  %v479 = vpop.f32.mrb[0].mxu0
  %v480 = vadd.f32 %v375, %v479
  %v481 = vpop.f32.mrb[0].mxu0
  %v482 = vpop.f32.mrb[0].mxu0
  %v483 = vadd.f32 %v380, %v482
  %v484 = vpop.f32.mrb[0].mxu0
  %485 = vmatprep.mubr.bf16.mxu0 0
  %486 = vmatmul.mubr.bf16.gmra.mrb[0].mxu0 %v437
  %v487 = vpop.f32.mrb[0].mxu0
  %v488 = vadd.f32 %v385, %v487
  %v489 = vpop.f32.mrb[0].mxu0
  %v490 = vpop.f32.mrb[0].mxu0
  %v491 = vadd.f32 %v390, %v490
  %v492 = vpop.f32.mrb[0].mxu0
  %493 = vmatprep.mubr.bf16.mxu0 0
  %494 = vmatmul.mubr.bf16.gmra.mrb[0].mxu0 %v440
  %v495 = vpop.f32.mrb[0].mxu0
  %v496 = vadd.f32 %v395, %v495
  %v497 = vpop.f32.mrb[0].mxu0
  %v498 = vpop.f32.mrb[0].mxu0
  %v499 = vadd.f32 %v400, %v498
  %v500 = vpop.f32.mrb[0].mxu0
  %501 = vmatprep.mubr.bf16.mxu0 0
  %502 = vmatmul.mubr.bf16.gmra.mrb[0].mxu0 %v443
  %v503 = vpop.f32.mrb[0].mxu0
  %v504 = vadd.f32 %v405, %v503
  %v505 = vpop.f32.mrb[0].mxu0
  %v506 = vpop.f32.mrb[0].mxu0
  %v507 = vadd.f32 %v410, %v506
  %v508 = vpop.f32.mrb[0].mxu0
  %509 = vdwg.mxu0
  %vm510 = vcmp.gt.f32.partialorder %v480, 0.0
  %vm511 = vcmp.gt.f32.partialorder %v483, 0.0
  %vm512 = vcmp.gt.f32.partialorder %v488, 0.0
  %vm513 = vcmp.gt.f32.partialorder %v491, 0.0
  %vm514 = vcmp.gt.f32.partialorder %v496, 0.0
  %vm515 = vcmp.gt.f32.partialorder %v499, 0.0
  %vm516 = vcmp.gt.f32.partialorder %v504, 0.0
  %vm517 = vcmp.gt.f32.partialorder %v507, 0.0
  %v518 = vmin.f32 %v480, 0.0
  %v519 = vmin.f32 %v483, 0.0
  %v520 = vmin.f32 %v488, 0.0
  %v521 = vmin.f32 %v491, 0.0
  %v522 = vmin.f32 %v496, 0.0
  %v523 = vmin.f32 %v499, 0.0
  %v524 = vmin.f32 %v504, 0.0
  %v525 = vmin.f32 %v507, 0.0
  %v526 = vmul.f32 %v518, 1.442695
  %v527 = vpow.pop %v526
  %v528 = vmul.f32 %v519, 1.442695
  %v529 = vpow.pop %v528
  %v530 = vmul.f32 %v520, 1.442695
  %v531 = vpow.pop %v530
  %v532 = vmul.f32 %v521, 1.442695
  %v533 = vpow.pop %v532
  %v534 = vmul.f32 %v522, 1.442695
  %v535 = vpow.pop %v534
  %v536 = vmul.f32 %v523, 1.442695
  %v537 = vpow.pop %v536
  %v538 = vmul.f32 %v524, 1.442695
  %v539 = vpow.pop %v538
  %v540 = vmul.f32 %v525, 1.442695
  %v541 = vpow.pop %v540
  %v542 = vsub.f32 %v527, 1.0
  %v543 = vsub.f32 %v529, 1.0
  %v544 = vsub.f32 %v531, 1.0
  %v545 = vsub.f32 %v533, 1.0
  %v546 = vsub.f32 %v535, 1.0
  %v547 = vsub.f32 %v537, 1.0
  %v548 = vsub.f32 %v539, 1.0
  %v549 = vsub.f32 %v541, 1.0
  %v550 = vsel %vm510, %v480, %v542
  %v551 = vsel %vm511, %v483, %v543
  %v552 = vsel %vm512, %v488, %v544
  %v553 = vsel %vm513, %v491, %v545
  %v554 = vsel %vm514, %v496, %v546
  %v555 = vsel %vm515, %v499, %v547
  %v556 = vsel %vm516, %v504, %v548
  %v557 = vsel %vm517, %v507, %v549
  %558 = vset.pattern.permute.xlu0 1
  %559 = vperm.xlu0 %558, %v364
  %v560 = vpop.permute.xlu0 %559
  %562 = vset.pattern.permute.xlu0 1
  %563 = vperm.xlu0 %562, %v365
  %v564 = vpop.permute.xlu0 %563
  %566 = vset.pattern.permute.xlu0 1
  %567 = vperm.xlu0 %566, %v366
  %v568 = vpop.permute.xlu0 %567
  %570 = vset.pattern.permute.xlu0 1
  %571 = vperm.xlu0 %570, %v367
  %v572 = vpop.permute.xlu0 %571
  %574 = vset.pattern.permute.xlu0 1
  %575 = vperm.xlu0 %574, %v368
  %v576 = vpop.permute.xlu0 %575
  %578 = vset.pattern.permute.xlu0 1
  %579 = vperm.xlu0 %578, %v369
  %v580 = vpop.permute.xlu0 %579
  %582 = vset.pattern.permute.xlu0 1
  %583 = vperm.xlu0 %582, %v370
  %v584 = vpop.permute.xlu0 %583
  %586 = vset.pattern.permute.xlu0 1
  %587 = vperm.xlu0 %586, %v371
  %v588 = vpop.permute.xlu0 %587
  %v590 = vmul.f32 %v550, %v560
  %v591 = vmul.f32 %v551, %v564
  %v592 = vmul.f32 %v552, %v568
  %v593 = vmul.f32 %v553, %v572
  %v594 = vmul.f32 %v554, %v576
  %v595 = vmul.f32 %v555, %v580
  %v596 = vmul.f32 %v556, %v584
  %v597 = vmul.f32 %v557, %v588
  %598 = vset.pattern.permute.xlu0 2
  %599 = vperm.xlu0 %598, %v364
  %v600 = vpop.permute.xlu0 %599
  %602 = vset.pattern.permute.xlu0 2
  %603 = vperm.xlu0 %602, %v365
  %v604 = vpop.permute.xlu0 %603
  %606 = vset.pattern.permute.xlu0 2
  %607 = vperm.xlu0 %606, %v366
  %v608 = vpop.permute.xlu0 %607
  %610 = vset.pattern.permute.xlu0 2
  %611 = vperm.xlu0 %610, %v367
  %v612 = vpop.permute.xlu0 %611
  %614 = vset.pattern.permute.xlu0 2
  %615 = vperm.xlu0 %614, %v368
  %v616 = vpop.permute.xlu0 %615
  %618 = vset.pattern.permute.xlu0 2
  %619 = vperm.xlu0 %618, %v369
  %v620 = vpop.permute.xlu0 %619
  %622 = vset.pattern.permute.xlu0 2
  %623 = vperm.xlu0 %622, %v370
  %v624 = vpop.permute.xlu0 %623
  %626 = vset.pattern.permute.xlu0 2
  %627 = vperm.xlu0 %626, %v371
  %v628 = vpop.permute.xlu0 %627
  %v630 = vadd.f32 %v590, %v600
  %v631 = vadd.f32 %v591, %v604
  %v632 = vadd.f32 %v592, %v608
  %v633 = vadd.f32 %v593, %v612
  %v634 = vadd.f32 %v594, %v616
  %v635 = vadd.f32 %v595, %v620
  %v636 = vadd.f32 %v596, %v624
  %v637 = vadd.f32 %v597, %v628
  %v638 = vld [vmem:[%s10] sm:$0xf]
  %v639 = vld [vmem:[%s10 + $0x4] sm:$0xf]
  %v640 = vld [vmem:[%s10 + $0x8] sm:$0xf]
  %v641 = vld [vmem:[%s10 + $0xc] sm:$0xf]
  %v642 = vld [vmem:[%s10 + $0x10] sm:$0xf]
  %v643 = vld [vmem:[%s10 + $0x14] sm:$0xf]
  %v644 = vld [vmem:[%s10 + $0x18] sm:$0xf]
  %v645 = vld [vmem:[%s10 + $0x1c] sm:$0xf]
  %v646 = vpack.c.bf16 %v631, %v630
  %v647 = vpack.c.bf16 %v633, %v632
  %v648 = vpack.c.bf16 %v635, %v634
  %v649 = vpack.c.bf16 %v637, %v636
  %v650 = vld [vmem:[%s11] sm:$0xff]
  %v651 = vld [vmem:[%s11 + $0x8] sm:$0xff]
  %v652 = vld [vmem:[%s11 + $0x10] sm:$0xff]
  %v653 = vld [vmem:[%s11 + $0x18] sm:$0xff]
  %v654 = vld [vmem:[%s11 + $0x20] sm:$0xff]
  %v655 = vld [vmem:[%s11 + $0x28] sm:$0xff]
  %v656 = vld [vmem:[%s11 + $0x30] sm:$0xff]
  %v657 = vld [vmem:[%s11 + $0x38] sm:$0xff]
  %659 = vset.pattern.permute.xlu0 0
  %660 = vperm.xlu0 %659, %v650
  %v661 = vpop.permute.xlu0 %660
  %664 = vset.pattern.permute.xlu0 0
  %665 = vperm.xlu0 %664, %v651
  %v666 = vpop.permute.xlu0 %665
  %669 = vset.pattern.permute.xlu0 0
  %670 = vperm.xlu0 %669, %v652
  %v671 = vpop.permute.xlu0 %670
  %674 = vset.pattern.permute.xlu0 0
  %675 = vperm.xlu0 %674, %v653
  %v676 = vpop.permute.xlu0 %675
  %679 = vset.pattern.permute.xlu0 0
  %680 = vperm.xlu0 %679, %v654
  %v681 = vpop.permute.xlu0 %680
  %684 = vset.pattern.permute.xlu0 0
  %685 = vperm.xlu0 %684, %v655
  %v686 = vpop.permute.xlu0 %685
  %689 = vset.pattern.permute.xlu0 0
  %690 = vperm.xlu0 %689, %v656
  %v691 = vpop.permute.xlu0 %690
  %694 = vset.pattern.permute.xlu0 0
  %695 = vperm.xlu0 %694, %v657
  %v696 = vpop.permute.xlu0 %695
  %v706 = vunpack.c.l.b16 %v638
  %v707 = vunpack.c.l.b16 %v639
  %v708 = vunpack.c.l.b16 %v640
  %v709 = vunpack.c.l.b16 %v641
  %v710 = vunpack.c.l.b16 %v642
  %v711 = vunpack.c.l.b16 %v643
  %v712 = vunpack.c.l.b16 %v644
  %v713 = vunpack.c.l.b16 %v645
  %v714 = vpack.c.b16 %v707, %v706
  %v715 = vpack.c.b16 %v709, %v708
  %v716 = vpack.c.b16 %v711, %v710
  %v717 = vpack.c.b16 %v713, %v712
  %v719 = vsel %vm432, %v714, 0
  %v722 = vsel %vm432, %v715, 0
  %v725 = vsel %vm432, %v716, 0
  %v728 = vsel %vm432, %v717, 0
  %730 = vmatprep.subr.bf16.mxu0 0
  %731 = vmatpush1.bf16.msra.mxu0 %v646
  %732 = vmatprep.subr.bf16.mxu0 0
  %733 = vmatpush1.bf16.msra.mxu0 %v647
  %734 = vmatprep.subr.bf16.mxu0 0
  %735 = vmatpush1.bf16.msra.mxu0 %v648
  %736 = vmatprep.subr.bf16.mxu0 0
  %737 = vmatpush1.bf16.msra.mxu0 %v649
  %738 = vmatprep.subr.bf16.mxu0 0
  %739 = vmatpush1.bf16.msra.mxu0 0
  %740 = vmatprep.subr.bf16.mxu0 0
  %741 = vmatpush1.bf16.msra.mxu0 0
  %742 = vmatprep.subr.bf16.mxu0 0
  %743 = vmatpush1.bf16.msra.mxu0 0
  %744 = vmatprep.subr.bf16.mxu0 0
  %745 = vmatpush1.bf16.msra.mxu0 0
  %746 = vmatprep.subr.bf16.mxu0 0
  %747 = vmatpush1.bf16.msra.mxu0 0
  %748 = vmatprep.subr.bf16.mxu0 0
  %749 = vmatpush1.bf16.msra.mxu0 0
  %750 = vmatprep.subr.bf16.mxu0 0
  %751 = vmatpush1.bf16.msra.mxu0 0
  %752 = vmatprep.subr.bf16.mxu0 0
  %753 = vmatpush1.bf16.msra.mxu0 0
  %754 = vmatprep.subr.bf16.mxu0 0
  %755 = vmatpush1.bf16.msra.mxu0 0
  %756 = vmatprep.subr.bf16.mxu0 0
  %757 = vmatpush1.bf16.msra.mxu0 0
  %758 = vmatprep.subr.bf16.mxu0 0
  %759 = vmatpush1.bf16.msra.mxu0 0
  %760 = vmatprep.subr.bf16.mxu0 0
  %761 = vmatpush1.bf16.msra.mxu0 0
  %762 = vmatprep.mubr.bf16.mxu0 0
  %763 = vmatmul.mubr.bf16.gmra.mrb[0].mxu0 %v719
  %v764 = vpop.f32.mrb[0].mxu0
  %v765 = vadd.f32 %v661, %v764
  %v766 = vpop.f32.mrb[0].mxu0
  %v767 = vpop.f32.mrb[0].mxu0
  %v768 = vadd.f32 %v666, %v767
  %v769 = vpop.f32.mrb[0].mxu0
  %770 = vmatprep.mubr.bf16.mxu0 0
  %771 = vmatmul.mubr.bf16.gmra.mrb[0].mxu0 %v722
  %v772 = vpop.f32.mrb[0].mxu0
  %v773 = vadd.f32 %v671, %v772
  %v774 = vpop.f32.mrb[0].mxu0
  %v775 = vpop.f32.mrb[0].mxu0
  %v776 = vadd.f32 %v676, %v775
  %v777 = vpop.f32.mrb[0].mxu0
  %778 = vmatprep.mubr.bf16.mxu0 0
  %779 = vmatmul.mubr.bf16.gmra.mrb[0].mxu0 %v725
  %v780 = vpop.f32.mrb[0].mxu0
  %v781 = vadd.f32 %v681, %v780
  %v782 = vpop.f32.mrb[0].mxu0
  %v783 = vpop.f32.mrb[0].mxu0
  %v784 = vadd.f32 %v686, %v783
  %v785 = vpop.f32.mrb[0].mxu0
  %786 = vmatprep.mubr.bf16.mxu0 0
  %787 = vmatmul.mubr.bf16.gmra.mrb[0].mxu0 %v728
  %v788 = vpop.f32.mrb[0].mxu0
  %v789 = vadd.f32 %v691, %v788
  %v790 = vpop.f32.mrb[0].mxu0
  %v791 = vpop.f32.mrb[0].mxu0
  %v792 = vadd.f32 %v696, %v791
  %v793 = vpop.f32.mrb[0].mxu0
  %794 = vdwg.mxu0
  %vm795 = vcmp.gt.f32.partialorder %v765, 0.0
  %vm796 = vcmp.gt.f32.partialorder %v768, 0.0
  %vm797 = vcmp.gt.f32.partialorder %v773, 0.0
  %vm798 = vcmp.gt.f32.partialorder %v776, 0.0
  %vm799 = vcmp.gt.f32.partialorder %v781, 0.0
  %vm800 = vcmp.gt.f32.partialorder %v784, 0.0
  %vm801 = vcmp.gt.f32.partialorder %v789, 0.0
  %vm802 = vcmp.gt.f32.partialorder %v792, 0.0
  %v803 = vmin.f32 %v765, 0.0
  %v804 = vmin.f32 %v768, 0.0
  %v805 = vmin.f32 %v773, 0.0
  %v806 = vmin.f32 %v776, 0.0
  %v807 = vmin.f32 %v781, 0.0
  %v808 = vmin.f32 %v784, 0.0
  %v809 = vmin.f32 %v789, 0.0
  %v810 = vmin.f32 %v792, 0.0
  %v811 = vmul.f32 %v803, 1.442695
  %v812 = vpow.pop %v811
  %v813 = vmul.f32 %v804, 1.442695
  %v814 = vpow.pop %v813
  %v815 = vmul.f32 %v805, 1.442695
  %v816 = vpow.pop %v815
  %v817 = vmul.f32 %v806, 1.442695
  %v818 = vpow.pop %v817
  %v819 = vmul.f32 %v807, 1.442695
  %v820 = vpow.pop %v819
  %v821 = vmul.f32 %v808, 1.442695
  %v822 = vpow.pop %v821
  %v823 = vmul.f32 %v809, 1.442695
  %v824 = vpow.pop %v823
  %v825 = vmul.f32 %v810, 1.442695
  %v826 = vpow.pop %v825
  %v827 = vsub.f32 %v812, 1.0
  %v828 = vsub.f32 %v814, 1.0
  %v829 = vsub.f32 %v816, 1.0
  %v830 = vsub.f32 %v818, 1.0
  %v831 = vsub.f32 %v820, 1.0
  %v832 = vsub.f32 %v822, 1.0
  %v833 = vsub.f32 %v824, 1.0
  %v834 = vsub.f32 %v826, 1.0
  %v835 = vsel %vm795, %v765, %v827
  %v836 = vsel %vm796, %v768, %v828
  %v837 = vsel %vm797, %v773, %v829
  %v838 = vsel %vm798, %v776, %v830
  %v839 = vsel %vm799, %v781, %v831
  %v840 = vsel %vm800, %v784, %v832
  %v841 = vsel %vm801, %v789, %v833
  %v842 = vsel %vm802, %v792, %v834
  %843 = vset.pattern.permute.xlu0 1
  %844 = vperm.xlu0 %843, %v650
  %v845 = vpop.permute.xlu0 %844
  %847 = vset.pattern.permute.xlu0 1
  %848 = vperm.xlu0 %847, %v651
  %v849 = vpop.permute.xlu0 %848
  %851 = vset.pattern.permute.xlu0 1
  %852 = vperm.xlu0 %851, %v652
  %v853 = vpop.permute.xlu0 %852
  %855 = vset.pattern.permute.xlu0 1
  %856 = vperm.xlu0 %855, %v653
  %v857 = vpop.permute.xlu0 %856
  %859 = vset.pattern.permute.xlu0 1
  %860 = vperm.xlu0 %859, %v654
  %v861 = vpop.permute.xlu0 %860
  %863 = vset.pattern.permute.xlu0 1
  %864 = vperm.xlu0 %863, %v655
  %v865 = vpop.permute.xlu0 %864
  %867 = vset.pattern.permute.xlu0 1
  %868 = vperm.xlu0 %867, %v656
  %v869 = vpop.permute.xlu0 %868
  %871 = vset.pattern.permute.xlu0 1
  %872 = vperm.xlu0 %871, %v657
  %v873 = vpop.permute.xlu0 %872
  %v875 = vmul.f32 %v835, %v845
  %v876 = vmul.f32 %v836, %v849
  %v877 = vmul.f32 %v837, %v853
  %v878 = vmul.f32 %v838, %v857
  %v879 = vmul.f32 %v839, %v861
  %v880 = vmul.f32 %v840, %v865
  %v881 = vmul.f32 %v841, %v869
  %v882 = vmul.f32 %v842, %v873
  %883 = vset.pattern.permute.xlu0 2
  %884 = vperm.xlu0 %883, %v650
  %v885 = vpop.permute.xlu0 %884
  %887 = vset.pattern.permute.xlu0 2
  %888 = vperm.xlu0 %887, %v651
  %v889 = vpop.permute.xlu0 %888
  %891 = vset.pattern.permute.xlu0 2
  %892 = vperm.xlu0 %891, %v652
  %v893 = vpop.permute.xlu0 %892
  %895 = vset.pattern.permute.xlu0 2
  %896 = vperm.xlu0 %895, %v653
  %v897 = vpop.permute.xlu0 %896
  %899 = vset.pattern.permute.xlu0 2
  %900 = vperm.xlu0 %899, %v654
  %v901 = vpop.permute.xlu0 %900
  %903 = vset.pattern.permute.xlu0 2
  %904 = vperm.xlu0 %903, %v655
  %v905 = vpop.permute.xlu0 %904
  %907 = vset.pattern.permute.xlu0 2
  %908 = vperm.xlu0 %907, %v656
  %v909 = vpop.permute.xlu0 %908
  %911 = vset.pattern.permute.xlu0 2
  %912 = vperm.xlu0 %911, %v657
  %v913 = vpop.permute.xlu0 %912
  %v915 = vadd.f32 %v875, %v885
  %v916 = vadd.f32 %v876, %v889
  %v917 = vadd.f32 %v877, %v893
  %v918 = vadd.f32 %v878, %v897
  %v919 = vadd.f32 %v879, %v901
  %v920 = vadd.f32 %v880, %v905
  %v921 = vadd.f32 %v881, %v909
  %v922 = vadd.f32 %v882, %v913
  %v923 = vld [vmem:[%s2] sm:$0xf]
  %v924 = vld [vmem:[%s2 + $0x4] sm:$0xf]
  %v925 = vld [vmem:[%s2 + $0x8] sm:$0xf]
  %v926 = vld [vmem:[%s2 + $0xc] sm:$0xf]
  %v927 = vld [vmem:[%s2 + $0x10] sm:$0xf]
  %v928 = vld [vmem:[%s2 + $0x14] sm:$0xf]
  %v929 = vld [vmem:[%s2 + $0x18] sm:$0xf]
  %v930 = vld [vmem:[%s2 + $0x1c] sm:$0xf]
  %v931 = vld [vmem:[%s2 + $0x20] sm:$0xf]
  %v932 = vld [vmem:[%s2 + $0x24] sm:$0xf]
  %v933 = vld [vmem:[%s2 + $0x28] sm:$0xf]
  %v934 = vld [vmem:[%s2 + $0x2c] sm:$0xf]
  %v935 = vld [vmem:[%s2 + $0x30] sm:$0xf]
  %v936 = vld [vmem:[%s2 + $0x34] sm:$0xf]
  %v937 = vld [vmem:[%s2 + $0x38] sm:$0xf]
  %v938 = vld [vmem:[%s2 + $0x3c] sm:$0xf]
  %v939 = vld [vmem:[%s3] sm:$0xff]
  %v940 = vld [vmem:[%s3 + $0x8] sm:$0xff]
  %v941 = vld [vmem:[%s3 + $0x10] sm:$0xff]
  %v942 = vld [vmem:[%s3 + $0x18] sm:$0xff]
  %v943 = vld [vmem:[%s3 + $0x20] sm:$0xff]
  %v944 = vld [vmem:[%s3 + $0x28] sm:$0xff]
  %v945 = vld [vmem:[%s3 + $0x30] sm:$0xff]
  %v946 = vld [vmem:[%s3 + $0x38] sm:$0xff]
  %v947 = vld [vmem:[%s3 + $0x40] sm:$0xff]
  %v948 = vld [vmem:[%s3 + $0x48] sm:$0xff]
  %v949 = vld [vmem:[%s3 + $0x50] sm:$0xff]
  %v950 = vld [vmem:[%s3 + $0x58] sm:$0xff]
  %v951 = vld [vmem:[%s3 + $0x60] sm:$0xff]
  %v952 = vld [vmem:[%s3 + $0x68] sm:$0xff]
  %v953 = vld [vmem:[%s3 + $0x70] sm:$0xff]
  %v954 = vld [vmem:[%s3 + $0x78] sm:$0xff]
  %956 = vset.pattern.permute.xlu0 0
  %957 = vperm.xlu0 %956, %v939
  %v958 = vpop.permute.xlu0 %957
  %961 = vset.pattern.permute.xlu0 0
  %962 = vperm.xlu0 %961, %v940
  %v963 = vpop.permute.xlu0 %962
  %966 = vset.pattern.permute.xlu0 0
  %967 = vperm.xlu0 %966, %v941
  %v968 = vpop.permute.xlu0 %967
  %971 = vset.pattern.permute.xlu0 0
  %972 = vperm.xlu0 %971, %v942
  %v973 = vpop.permute.xlu0 %972
  %976 = vset.pattern.permute.xlu0 0
  %977 = vperm.xlu0 %976, %v943
  %v978 = vpop.permute.xlu0 %977
  %981 = vset.pattern.permute.xlu0 0
  %982 = vperm.xlu0 %981, %v944
  %v983 = vpop.permute.xlu0 %982
  %986 = vset.pattern.permute.xlu0 0
  %987 = vperm.xlu0 %986, %v945
  %v988 = vpop.permute.xlu0 %987
  %991 = vset.pattern.permute.xlu0 0
  %992 = vperm.xlu0 %991, %v946
  %v993 = vpop.permute.xlu0 %992
  %996 = vset.pattern.permute.xlu0 0
  %997 = vperm.xlu0 %996, %v947
  %v998 = vpop.permute.xlu0 %997
  %1001 = vset.pattern.permute.xlu0 0
  %1002 = vperm.xlu0 %1001, %v948
  %v1003 = vpop.permute.xlu0 %1002
  %1006 = vset.pattern.permute.xlu0 0
  %1007 = vperm.xlu0 %1006, %v949
  %v1008 = vpop.permute.xlu0 %1007
  %1011 = vset.pattern.permute.xlu0 0
  %1012 = vperm.xlu0 %1011, %v950
  %v1013 = vpop.permute.xlu0 %1012
  %1016 = vset.pattern.permute.xlu0 0
  %1017 = vperm.xlu0 %1016, %v951
  %v1018 = vpop.permute.xlu0 %1017
  %1021 = vset.pattern.permute.xlu0 0
  %1022 = vperm.xlu0 %1021, %v952
  %v1023 = vpop.permute.xlu0 %1022
  %1026 = vset.pattern.permute.xlu0 0
  %1027 = vperm.xlu0 %1026, %v953
  %v1028 = vpop.permute.xlu0 %1027
  %1031 = vset.pattern.permute.xlu0 0
  %1032 = vperm.xlu0 %1031, %v954
  %v1033 = vpop.permute.xlu0 %1032
  %v1051 = vunpack.c.l.b16 %v923
  %v1052 = vunpack.c.l.b16 %v924
  %v1053 = vunpack.c.l.b16 %v925
  %v1054 = vunpack.c.l.b16 %v926
  %v1055 = vunpack.c.l.b16 %v927
  %v1056 = vunpack.c.l.b16 %v928
  %v1057 = vunpack.c.l.b16 %v929
  %v1058 = vunpack.c.l.b16 %v930
  %v1059 = vunpack.c.l.b16 %v931
  %v1060 = vunpack.c.l.b16 %v932
  %v1061 = vunpack.c.l.b16 %v933
  %v1062 = vunpack.c.l.b16 %v934
  %v1063 = vunpack.c.l.b16 %v935
  %v1064 = vunpack.c.l.b16 %v936
  %v1065 = vunpack.c.l.b16 %v937
  %v1066 = vunpack.c.l.b16 %v938
  %v1067 = vpack.c.b16 %v1052, %v1051
  %v1068 = vpack.c.b16 %v1054, %v1053
  %v1069 = vpack.c.b16 %v1056, %v1055
  %v1070 = vpack.c.b16 %v1058, %v1057
  %v1071 = vpack.c.b16 %v1060, %v1059
  %v1072 = vpack.c.b16 %v1062, %v1061
  %v1073 = vpack.c.b16 %v1064, %v1063
  %v1074 = vpack.c.b16 %v1066, %v1065
  %v1076 = vsel %vm142, %v1067, 0
  %v1079 = vsel %vm142, %v1068, 0
  %v1082 = vsel %vm142, %v1069, 0
  %v1085 = vsel %vm142, %v1070, 0
  %v1088 = vsel %vm142, %v1071, 0
  %v1091 = vsel %vm142, %v1072, 0
  %v1094 = vsel %vm142, %v1073, 0
  %v1097 = vsel %vm142, %v1074, 0
  %1099 = vmatprep.subr.bf16.mxu0 0
  %1100 = vmatpush1.bf16.msra.mxu0 %v72
  %1101 = vmatprep.subr.bf16.mxu0 0
  %1102 = vmatpush1.bf16.msra.mxu0 %v157
  %1103 = vmatprep.subr.bf16.mxu0 0
  %1104 = vmatpush1.bf16.msra.mxu0 0
  %1105 = vmatprep.subr.bf16.mxu0 0
  %1106 = vmatpush1.bf16.msra.mxu0 0
  %1107 = vmatprep.subr.bf16.mxu0 0
  %1108 = vmatpush1.bf16.msra.mxu0 0
  %1109 = vmatprep.subr.bf16.mxu0 0
  %1110 = vmatpush1.bf16.msra.mxu0 0
  %1111 = vmatprep.subr.bf16.mxu0 0
  %1112 = vmatpush1.bf16.msra.mxu0 0
  %1113 = vmatprep.subr.bf16.mxu0 0
  %1114 = vmatpush1.bf16.msra.mxu0 0
  %1115 = vmatprep.subr.bf16.mxu0 0
  %1116 = vmatpush1.bf16.msra.mxu0 0
  %1117 = vmatprep.subr.bf16.mxu0 0
  %1118 = vmatpush1.bf16.msra.mxu0 0
  %1119 = vmatprep.subr.bf16.mxu0 0
  %1120 = vmatpush1.bf16.msra.mxu0 0
  %1121 = vmatprep.subr.bf16.mxu0 0
  %1122 = vmatpush1.bf16.msra.mxu0 0
  %1123 = vmatprep.subr.bf16.mxu0 0
  %1124 = vmatpush1.bf16.msra.mxu0 0
  %1125 = vmatprep.subr.bf16.mxu0 0
  %1126 = vmatpush1.bf16.msra.mxu0 0
  %1127 = vmatprep.subr.bf16.mxu0 0
  %1128 = vmatpush1.bf16.msra.mxu0 0
  %1129 = vmatprep.subr.bf16.mxu0 0
  %1130 = vmatpush1.bf16.msra.mxu0 0
  %1131 = vmatprep.mubr.bf16.mxu0 0
  %1132 = vmatmul.mubr.bf16.gmra.mrb[0].mxu0 %v1076
  %v1133 = vpop.f32.mrb[0].mxu0
  %v1134 = vadd.f32 %v958, %v1133
  %v1135 = vpop.f32.mrb[0].mxu0
  %v1136 = vpop.f32.mrb[0].mxu0
  %v1137 = vadd.f32 %v963, %v1136
  %v1138 = vpop.f32.mrb[0].mxu0
  %1139 = vmatprep.mubr.bf16.mxu0 0
  %1140 = vmatmul.mubr.bf16.gmra.mrb[0].mxu0 %v1079
  %v1141 = vpop.f32.mrb[0].mxu0
  %v1142 = vadd.f32 %v968, %v1141
  %v1143 = vpop.f32.mrb[0].mxu0
  %v1144 = vpop.f32.mrb[0].mxu0
  %v1145 = vadd.f32 %v973, %v1144
  %v1146 = vpop.f32.mrb[0].mxu0
  %1147 = vmatprep.mubr.bf16.mxu0 0
  %1148 = vmatmul.mubr.bf16.gmra.mrb[0].mxu0 %v1082
  %v1149 = vpop.f32.mrb[0].mxu0
  %v1150 = vadd.f32 %v978, %v1149
  %v1151 = vpop.f32.mrb[0].mxu0
  %v1152 = vpop.f32.mrb[0].mxu0
  %v1153 = vadd.f32 %v983, %v1152
  %v1154 = vpop.f32.mrb[0].mxu0
  %1155 = vmatprep.mubr.bf16.mxu0 0
  %1156 = vmatmul.mubr.bf16.gmra.mrb[0].mxu0 %v1085
  %v1157 = vpop.f32.mrb[0].mxu0
  %v1158 = vadd.f32 %v988, %v1157
  %v1159 = vpop.f32.mrb[0].mxu0
  %v1160 = vpop.f32.mrb[0].mxu0
  %v1161 = vadd.f32 %v993, %v1160
  %v1162 = vpop.f32.mrb[0].mxu0
  %1163 = vmatprep.mubr.bf16.mxu0 0
  %1164 = vmatmul.mubr.bf16.gmra.mrb[0].mxu0 %v1088
  %v1165 = vpop.f32.mrb[0].mxu0
  %v1166 = vadd.f32 %v998, %v1165
  %v1167 = vpop.f32.mrb[0].mxu0
  %v1168 = vpop.f32.mrb[0].mxu0
  %v1169 = vadd.f32 %v1003, %v1168
  %v1170 = vpop.f32.mrb[0].mxu0
  %1171 = vmatprep.mubr.bf16.mxu0 0
  %1172 = vmatmul.mubr.bf16.gmra.mrb[0].mxu0 %v1091
  %v1173 = vpop.f32.mrb[0].mxu0
  %v1174 = vadd.f32 %v1008, %v1173
  %v1175 = vpop.f32.mrb[0].mxu0
  %v1176 = vpop.f32.mrb[0].mxu0
  %v1177 = vadd.f32 %v1013, %v1176
  %v1178 = vpop.f32.mrb[0].mxu0
  %1179 = vmatprep.mubr.bf16.mxu0 0
  %1180 = vmatmul.mubr.bf16.gmra.mrb[0].mxu0 %v1094
  %v1181 = vpop.f32.mrb[0].mxu0
  %v1182 = vadd.f32 %v1018, %v1181
  %v1183 = vpop.f32.mrb[0].mxu0
  %v1184 = vpop.f32.mrb[0].mxu0
  %v1185 = vadd.f32 %v1023, %v1184
  %v1186 = vpop.f32.mrb[0].mxu0
  %1187 = vmatprep.mubr.bf16.mxu0 0
  %1188 = vmatmul.mubr.bf16.gmra.mrb[0].mxu0 %v1097
  %v1189 = vpop.f32.mrb[0].mxu0
  %v1190 = vadd.f32 %v1028, %v1189
  %v1191 = vpop.f32.mrb[0].mxu0
  %v1192 = vpop.f32.mrb[0].mxu0
  %v1193 = vadd.f32 %v1033, %v1192
  %v1194 = vpop.f32.mrb[0].mxu0
  %1195 = vdwg.mxu0
  %vm1196 = vcmp.gt.f32.partialorder %v1134, 0.0
  %vm1197 = vcmp.gt.f32.partialorder %v1137, 0.0
  %vm1198 = vcmp.gt.f32.partialorder %v1142, 0.0
  %vm1199 = vcmp.gt.f32.partialorder %v1145, 0.0
  %vm1200 = vcmp.gt.f32.partialorder %v1150, 0.0
  %vm1201 = vcmp.gt.f32.partialorder %v1153, 0.0
  %vm1202 = vcmp.gt.f32.partialorder %v1158, 0.0
  %vm1203 = vcmp.gt.f32.partialorder %v1161, 0.0
  %vm1204 = vcmp.gt.f32.partialorder %v1166, 0.0
  %vm1205 = vcmp.gt.f32.partialorder %v1169, 0.0
  %vm1206 = vcmp.gt.f32.partialorder %v1174, 0.0
  %vm1207 = vcmp.gt.f32.partialorder %v1177, 0.0
  %vm1208 = vcmp.gt.f32.partialorder %v1182, 0.0
  %vm1209 = vcmp.gt.f32.partialorder %v1185, 0.0
  %vm1210 = vcmp.gt.f32.partialorder %v1190, 0.0
  %vm1211 = vcmp.gt.f32.partialorder %v1193, 0.0
  %v1212 = vmin.f32 %v1134, 0.0
  %v1213 = vmin.f32 %v1137, 0.0
  %v1214 = vmin.f32 %v1142, 0.0
  %v1215 = vmin.f32 %v1145, 0.0
  %v1216 = vmin.f32 %v1150, 0.0
  %v1217 = vmin.f32 %v1153, 0.0
  %v1218 = vmin.f32 %v1158, 0.0
  %v1219 = vmin.f32 %v1161, 0.0
  %v1220 = vmin.f32 %v1166, 0.0
  %v1221 = vmin.f32 %v1169, 0.0
  %v1222 = vmin.f32 %v1174, 0.0
  %v1223 = vmin.f32 %v1177, 0.0
  %v1224 = vmin.f32 %v1182, 0.0
  %v1225 = vmin.f32 %v1185, 0.0
  %v1226 = vmin.f32 %v1190, 0.0
  %v1227 = vmin.f32 %v1193, 0.0
  %v1228 = vmul.f32 %v1212, 1.442695
  %v1229 = vpow.pop %v1228
  %v1230 = vmul.f32 %v1213, 1.442695
  %v1231 = vpow.pop %v1230
  %v1232 = vmul.f32 %v1214, 1.442695
  %v1233 = vpow.pop %v1232
  %v1234 = vmul.f32 %v1215, 1.442695
  %v1235 = vpow.pop %v1234
  %v1236 = vmul.f32 %v1216, 1.442695
  %v1237 = vpow.pop %v1236
  %v1238 = vmul.f32 %v1217, 1.442695
  %v1239 = vpow.pop %v1238
  %v1240 = vmul.f32 %v1218, 1.442695
  %v1241 = vpow.pop %v1240
  %v1242 = vmul.f32 %v1219, 1.442695
  %v1243 = vpow.pop %v1242
  %v1244 = vmul.f32 %v1220, 1.442695
  %v1245 = vpow.pop %v1244
  %v1246 = vmul.f32 %v1221, 1.442695
  %v1247 = vpow.pop %v1246
  %v1248 = vmul.f32 %v1222, 1.442695
  %v1249 = vpow.pop %v1248
  %v1250 = vmul.f32 %v1223, 1.442695
  %v1251 = vpow.pop %v1250
  %v1252 = vmul.f32 %v1224, 1.442695
  %v1253 = vpow.pop %v1252
  %v1254 = vmul.f32 %v1225, 1.442695
  %v1255 = vpow.pop %v1254
  %v1256 = vmul.f32 %v1226, 1.442695
  %v1257 = vpow.pop %v1256
  %v1258 = vmul.f32 %v1227, 1.442695
  %v1259 = vpow.pop %v1258
  %v1260 = vsub.f32 %v1229, 1.0
  %v1261 = vsub.f32 %v1231, 1.0
  %v1262 = vsub.f32 %v1233, 1.0
  %v1263 = vsub.f32 %v1235, 1.0
  %v1264 = vsub.f32 %v1237, 1.0
  %v1265 = vsub.f32 %v1239, 1.0
  %v1266 = vsub.f32 %v1241, 1.0
  %v1267 = vsub.f32 %v1243, 1.0
  %v1268 = vsub.f32 %v1245, 1.0
  %v1269 = vsub.f32 %v1247, 1.0
  %v1270 = vsub.f32 %v1249, 1.0
  %v1271 = vsub.f32 %v1251, 1.0
  %v1272 = vsub.f32 %v1253, 1.0
  %v1273 = vsub.f32 %v1255, 1.0
  %v1274 = vsub.f32 %v1257, 1.0
  %v1275 = vsub.f32 %v1259, 1.0
  %v1276 = vsel %vm1196, %v1134, %v1260
  %v1277 = vsel %vm1197, %v1137, %v1261
  %v1278 = vsel %vm1198, %v1142, %v1262
  %v1279 = vsel %vm1199, %v1145, %v1263
  %v1280 = vsel %vm1200, %v1150, %v1264
  %v1281 = vsel %vm1201, %v1153, %v1265
  %v1282 = vsel %vm1202, %v1158, %v1266
  %v1283 = vsel %vm1203, %v1161, %v1267
  %v1284 = vsel %vm1204, %v1166, %v1268
  %v1285 = vsel %vm1205, %v1169, %v1269
  %v1286 = vsel %vm1206, %v1174, %v1270
  %v1287 = vsel %vm1207, %v1177, %v1271
  %v1288 = vsel %vm1208, %v1182, %v1272
  %v1289 = vsel %vm1209, %v1185, %v1273
  %v1290 = vsel %vm1210, %v1190, %v1274
  %v1291 = vsel %vm1211, %v1193, %v1275
  %1292 = vset.pattern.permute.xlu0 1
  %1293 = vperm.xlu0 %1292, %v939
  %v1294 = vpop.permute.xlu0 %1293
  %1296 = vset.pattern.permute.xlu0 1
  %1297 = vperm.xlu0 %1296, %v940
  %v1298 = vpop.permute.xlu0 %1297
  %1300 = vset.pattern.permute.xlu0 1
  %1301 = vperm.xlu0 %1300, %v941
  %v1302 = vpop.permute.xlu0 %1301
  %1304 = vset.pattern.permute.xlu0 1
  %1305 = vperm.xlu0 %1304, %v942
  %v1306 = vpop.permute.xlu0 %1305
  %1308 = vset.pattern.permute.xlu0 1
  %1309 = vperm.xlu0 %1308, %v943
  %v1310 = vpop.permute.xlu0 %1309
  %1312 = vset.pattern.permute.xlu0 1
  %1313 = vperm.xlu0 %1312, %v944
  %v1314 = vpop.permute.xlu0 %1313
  %1316 = vset.pattern.permute.xlu0 1
  %1317 = vperm.xlu0 %1316, %v945
  %v1318 = vpop.permute.xlu0 %1317
  %1320 = vset.pattern.permute.xlu0 1
  %1321 = vperm.xlu0 %1320, %v946
  %v1322 = vpop.permute.xlu0 %1321
  %1324 = vset.pattern.permute.xlu0 1
  %1325 = vperm.xlu0 %1324, %v947
  %v1326 = vpop.permute.xlu0 %1325
  %1328 = vset.pattern.permute.xlu0 1
  %1329 = vperm.xlu0 %1328, %v948
  %v1330 = vpop.permute.xlu0 %1329
  %1332 = vset.pattern.permute.xlu0 1
  %1333 = vperm.xlu0 %1332, %v949
  %v1334 = vpop.permute.xlu0 %1333
  %1336 = vset.pattern.permute.xlu0 1
  %1337 = vperm.xlu0 %1336, %v950
  %v1338 = vpop.permute.xlu0 %1337
  %1340 = vset.pattern.permute.xlu0 1
  %1341 = vperm.xlu0 %1340, %v951
  %v1342 = vpop.permute.xlu0 %1341
  %1344 = vset.pattern.permute.xlu0 1
  %1345 = vperm.xlu0 %1344, %v952
  %v1346 = vpop.permute.xlu0 %1345
  %1348 = vset.pattern.permute.xlu0 1
  %1349 = vperm.xlu0 %1348, %v953
  %v1350 = vpop.permute.xlu0 %1349
  %1352 = vset.pattern.permute.xlu0 1
  %1353 = vperm.xlu0 %1352, %v954
  %v1354 = vpop.permute.xlu0 %1353
  %v1356 = vmul.f32 %v1276, %v1294
  %v1357 = vmul.f32 %v1277, %v1298
  %v1358 = vmul.f32 %v1278, %v1302
  %v1359 = vmul.f32 %v1279, %v1306
  %v1360 = vmul.f32 %v1280, %v1310
  %v1361 = vmul.f32 %v1281, %v1314
  %v1362 = vmul.f32 %v1282, %v1318
  %v1363 = vmul.f32 %v1283, %v1322
  %v1364 = vmul.f32 %v1284, %v1326
  %v1365 = vmul.f32 %v1285, %v1330
  %v1366 = vmul.f32 %v1286, %v1334
  %v1367 = vmul.f32 %v1287, %v1338
  %v1368 = vmul.f32 %v1288, %v1342
  %v1369 = vmul.f32 %v1289, %v1346
  %v1370 = vmul.f32 %v1290, %v1350
  %v1371 = vmul.f32 %v1291, %v1354
  %1372 = vset.pattern.permute.xlu0 2
  %1373 = vperm.xlu0 %1372, %v939
  %v1374 = vpop.permute.xlu0 %1373
  %1376 = vset.pattern.permute.xlu0 2
  %1377 = vperm.xlu0 %1376, %v940
  %v1378 = vpop.permute.xlu0 %1377
  %1380 = vset.pattern.permute.xlu0 2
  %1381 = vperm.xlu0 %1380, %v941
  %v1382 = vpop.permute.xlu0 %1381
  %1384 = vset.pattern.permute.xlu0 2
  %1385 = vperm.xlu0 %1384, %v942
  %v1386 = vpop.permute.xlu0 %1385
  %1388 = vset.pattern.permute.xlu0 2
  %1389 = vperm.xlu0 %1388, %v943
  %v1390 = vpop.permute.xlu0 %1389
  %1392 = vset.pattern.permute.xlu0 2
  %1393 = vperm.xlu0 %1392, %v944
  %v1394 = vpop.permute.xlu0 %1393
  %1396 = vset.pattern.permute.xlu0 2
  %1397 = vperm.xlu0 %1396, %v945
  %v1398 = vpop.permute.xlu0 %1397
  %1400 = vset.pattern.permute.xlu0 2
  %1401 = vperm.xlu0 %1400, %v946
  %v1402 = vpop.permute.xlu0 %1401
  %1404 = vset.pattern.permute.xlu0 2
  %1405 = vperm.xlu0 %1404, %v947
  %v1406 = vpop.permute.xlu0 %1405
  %1408 = vset.pattern.permute.xlu0 2
  %1409 = vperm.xlu0 %1408, %v948
  %v1410 = vpop.permute.xlu0 %1409
  %1412 = vset.pattern.permute.xlu0 2
  %1413 = vperm.xlu0 %1412, %v949
  %v1414 = vpop.permute.xlu0 %1413
  %1416 = vset.pattern.permute.xlu0 2
  %1417 = vperm.xlu0 %1416, %v950
  %v1418 = vpop.permute.xlu0 %1417
  %1420 = vset.pattern.permute.xlu0 2
  %1421 = vperm.xlu0 %1420, %v951
  %v1422 = vpop.permute.xlu0 %1421
  %1424 = vset.pattern.permute.xlu0 2
  %1425 = vperm.xlu0 %1424, %v952
  %v1426 = vpop.permute.xlu0 %1425
  %1428 = vset.pattern.permute.xlu0 2
  %1429 = vperm.xlu0 %1428, %v953
  %v1430 = vpop.permute.xlu0 %1429
  %1432 = vset.pattern.permute.xlu0 2
  %1433 = vperm.xlu0 %1432, %v954
  %v1434 = vpop.permute.xlu0 %1433
  %v1436 = vadd.f32 %v1356, %v1374
  %v1437 = vadd.f32 %v1357, %v1378
  %v1438 = vadd.f32 %v1358, %v1382
  %v1439 = vadd.f32 %v1359, %v1386
  %v1440 = vadd.f32 %v1360, %v1390
  %v1441 = vadd.f32 %v1361, %v1394
  %v1442 = vadd.f32 %v1362, %v1398
  %v1443 = vadd.f32 %v1363, %v1402
  %v1444 = vadd.f32 %v1364, %v1406
  %v1445 = vadd.f32 %v1365, %v1410
  %v1446 = vadd.f32 %v1366, %v1414
  %v1447 = vadd.f32 %v1367, %v1418
  %v1448 = vadd.f32 %v1368, %v1422
  %v1449 = vadd.f32 %v1369, %v1426
  %v1450 = vadd.f32 %v1370, %v1430
  %v1451 = vadd.f32 %v1371, %v1434
  %v1452 = vld [vmem:[%s4] sm:$0xf]
  %v1453 = vld [vmem:[%s4 + $0x4] sm:$0xf]
  %v1454 = vld [vmem:[%s4 + $0x8] sm:$0xf]
  %v1455 = vld [vmem:[%s4 + $0xc] sm:$0xf]
  %v1456 = vld [vmem:[%s4 + $0x10] sm:$0xf]
  %v1457 = vld [vmem:[%s4 + $0x14] sm:$0xf]
  %v1458 = vld [vmem:[%s4 + $0x18] sm:$0xf]
  %v1459 = vld [vmem:[%s4 + $0x1c] sm:$0xf]
  %v1460 = vld [vmem:[%s4 + $0x20] sm:$0xf]
  %v1461 = vld [vmem:[%s4 + $0x24] sm:$0xf]
  %v1462 = vld [vmem:[%s4 + $0x28] sm:$0xf]
  %v1463 = vld [vmem:[%s4 + $0x2c] sm:$0xf]
  %v1464 = vld [vmem:[%s4 + $0x30] sm:$0xf]
  %v1465 = vld [vmem:[%s4 + $0x34] sm:$0xf]
  %v1466 = vld [vmem:[%s4 + $0x38] sm:$0xf]
  %v1467 = vld [vmem:[%s4 + $0x3c] sm:$0xf]
  %v1468 = vpack.c.bf16 %v1437, %v1436
  %v1469 = vpack.c.bf16 %v1439, %v1438
  %v1470 = vpack.c.bf16 %v1441, %v1440
  %v1471 = vpack.c.bf16 %v1443, %v1442
  %v1472 = vpack.c.bf16 %v1445, %v1444
  %v1473 = vpack.c.bf16 %v1447, %v1446
  %v1474 = vpack.c.bf16 %v1449, %v1448
  %v1475 = vpack.c.bf16 %v1451, %v1450
  %v1476 = vld [vmem:[%s5] sm:$0xff]
  %v1477 = vld [vmem:[%s5 + $0x8] sm:$0xff]
  %v1478 = vld [vmem:[%s5 + $0x10] sm:$0xff]
  %v1479 = vld [vmem:[%s5 + $0x18] sm:$0xff]
  %v1480 = vld [vmem:[%s5 + $0x20] sm:$0xff]
  %v1481 = vld [vmem:[%s5 + $0x28] sm:$0xff]
  %v1482 = vld [vmem:[%s5 + $0x30] sm:$0xff]
  %v1483 = vld [vmem:[%s5 + $0x38] sm:$0xff]
  %v1484 = vld [vmem:[%s5 + $0x40] sm:$0xff]
  %v1485 = vld [vmem:[%s5 + $0x48] sm:$0xff]
  %v1486 = vld [vmem:[%s5 + $0x50] sm:$0xff]
  %v1487 = vld [vmem:[%s5 + $0x58] sm:$0xff]
  %v1488 = vld [vmem:[%s5 + $0x60] sm:$0xff]
  %v1489 = vld [vmem:[%s5 + $0x68] sm:$0xff]
  %v1490 = vld [vmem:[%s5 + $0x70] sm:$0xff]
  %v1491 = vld [vmem:[%s5 + $0x78] sm:$0xff]
  %1493 = vset.pattern.permute.xlu0 0
  %1494 = vperm.xlu0 %1493, %v1476
  %v1495 = vpop.permute.xlu0 %1494
  %1498 = vset.pattern.permute.xlu0 0
  %1499 = vperm.xlu0 %1498, %v1477
  %v1500 = vpop.permute.xlu0 %1499
  %1503 = vset.pattern.permute.xlu0 0
  %1504 = vperm.xlu0 %1503, %v1478
  %v1505 = vpop.permute.xlu0 %1504
  %1508 = vset.pattern.permute.xlu0 0
  %1509 = vperm.xlu0 %1508, %v1479
  %v1510 = vpop.permute.xlu0 %1509
  %1513 = vset.pattern.permute.xlu0 0
  %1514 = vperm.xlu0 %1513, %v1480
  %v1515 = vpop.permute.xlu0 %1514
  %1518 = vset.pattern.permute.xlu0 0
  %1519 = vperm.xlu0 %1518, %v1481
  %v1520 = vpop.permute.xlu0 %1519
  %1523 = vset.pattern.permute.xlu0 0
  %1524 = vperm.xlu0 %1523, %v1482
  %v1525 = vpop.permute.xlu0 %1524
  %1528 = vset.pattern.permute.xlu0 0
  %1529 = vperm.xlu0 %1528, %v1483
  %v1530 = vpop.permute.xlu0 %1529
  %1533 = vset.pattern.permute.xlu0 0
  %1534 = vperm.xlu0 %1533, %v1484
  %v1535 = vpop.permute.xlu0 %1534
  %1538 = vset.pattern.permute.xlu0 0
  %1539 = vperm.xlu0 %1538, %v1485
  %v1540 = vpop.permute.xlu0 %1539
  %1543 = vset.pattern.permute.xlu0 0
  %1544 = vperm.xlu0 %1543, %v1486
  %v1545 = vpop.permute.xlu0 %1544
  %1548 = vset.pattern.permute.xlu0 0
  %1549 = vperm.xlu0 %1548, %v1487
  %v1550 = vpop.permute.xlu0 %1549
  %1553 = vset.pattern.permute.xlu0 0
  %1554 = vperm.xlu0 %1553, %v1488
  %v1555 = vpop.permute.xlu0 %1554
  %1558 = vset.pattern.permute.xlu0 0
  %1559 = vperm.xlu0 %1558, %v1489
  %v1560 = vpop.permute.xlu0 %1559
  %1563 = vset.pattern.permute.xlu0 0
  %1564 = vperm.xlu0 %1563, %v1490
  %v1565 = vpop.permute.xlu0 %1564
  %1568 = vset.pattern.permute.xlu0 0
  %1569 = vperm.xlu0 %1568, %v1491
  %v1570 = vpop.permute.xlu0 %1569
  %v1588 = vunpack.c.l.b16 %v1452
  %v1589 = vunpack.c.l.b16 %v1453
  %v1590 = vunpack.c.l.b16 %v1454
  %v1591 = vunpack.c.l.b16 %v1455
  %v1592 = vunpack.c.l.b16 %v1456
  %v1593 = vunpack.c.l.b16 %v1457
  %v1594 = vunpack.c.l.b16 %v1458
  %v1595 = vunpack.c.l.b16 %v1459
  %v1596 = vunpack.c.l.b16 %v1460
  %v1597 = vunpack.c.l.b16 %v1461
  %v1598 = vunpack.c.l.b16 %v1462
  %v1599 = vunpack.c.l.b16 %v1463
  %v1600 = vunpack.c.l.b16 %v1464
  %v1601 = vunpack.c.l.b16 %v1465
  %v1602 = vunpack.c.l.b16 %v1466
  %v1603 = vunpack.c.l.b16 %v1467
  %v1604 = vpack.c.b16 %v1589, %v1588
  %v1605 = vpack.c.b16 %v1591, %v1590
  %v1606 = vpack.c.b16 %v1593, %v1592
  %v1607 = vpack.c.b16 %v1595, %v1594
  %v1608 = vpack.c.b16 %v1597, %v1596
  %v1609 = vpack.c.b16 %v1599, %v1598
  %v1610 = vpack.c.b16 %v1601, %v1600
  %v1611 = vpack.c.b16 %v1603, %v1602
  %1620 = vmatprep.subr.bf16.mxu0 0
  %1621 = vmatpush1.bf16.msra.mxu0 %v1468
  %1622 = vmatprep.subr.bf16.mxu0 0
  %1623 = vmatpush1.bf16.msra.mxu0 %v1469
  %1624 = vmatprep.subr.bf16.mxu0 0
  %1625 = vmatpush1.bf16.msra.mxu0 %v1470
  %1626 = vmatprep.subr.bf16.mxu0 0
  %1627 = vmatpush1.bf16.msra.mxu0 %v1471
  %1628 = vmatprep.subr.bf16.mxu0 0
  %1629 = vmatpush1.bf16.msra.mxu0 %v1472
  %1630 = vmatprep.subr.bf16.mxu0 0
  %1631 = vmatpush1.bf16.msra.mxu0 %v1473
  %1632 = vmatprep.subr.bf16.mxu0 0
  %1633 = vmatpush1.bf16.msra.mxu0 %v1474
  %1634 = vmatprep.subr.bf16.mxu0 0
  %1635 = vmatpush1.bf16.msra.mxu0 %v1475
  %1636 = vmatprep.subr.bf16.mxu0 0
  %1637 = vmatpush1.bf16.msra.mxu0 0
  %1638 = vmatprep.subr.bf16.mxu0 0
  %1639 = vmatpush1.bf16.msra.mxu0 0
  %1640 = vmatprep.subr.bf16.mxu0 0
  %1641 = vmatpush1.bf16.msra.mxu0 0
  %1642 = vmatprep.subr.bf16.mxu0 0
  %1643 = vmatpush1.bf16.msra.mxu0 0
  %1644 = vmatprep.subr.bf16.mxu0 0
  %1645 = vmatpush1.bf16.msra.mxu0 0
  %1646 = vmatprep.subr.bf16.mxu0 0
  %1647 = vmatpush1.bf16.msra.mxu0 0
  %1648 = vmatprep.subr.bf16.mxu0 0
  %1649 = vmatpush1.bf16.msra.mxu0 0
  %1650 = vmatprep.subr.bf16.mxu0 0
  %1651 = vmatpush1.bf16.msra.mxu0 0
  %1652 = vmatprep.mubr.bf16.mxu0 0
  %1653 = vmatmul.mubr.bf16.gmra.mrb[0].mxu0 %v1604
  %v1654 = vpop.f32.mrb[0].mxu0
  %v1655 = vadd.f32 %v1495, %v1654
  %v1656 = vpop.f32.mrb[0].mxu0
  %v1657 = vpop.f32.mrb[0].mxu0
  %v1658 = vadd.f32 %v1500, %v1657
  %v1659 = vpop.f32.mrb[0].mxu0
  %1660 = vmatprep.mubr.bf16.mxu0 0
  %1661 = vmatmul.mubr.bf16.gmra.mrb[0].mxu0 %v1605
  %v1662 = vpop.f32.mrb[0].mxu0
  %v1663 = vadd.f32 %v1505, %v1662
  %v1664 = vpop.f32.mrb[0].mxu0
  %v1665 = vpop.f32.mrb[0].mxu0
  %v1666 = vadd.f32 %v1510, %v1665
  %v1667 = vpop.f32.mrb[0].mxu0
  %1668 = vmatprep.mubr.bf16.mxu0 0
  %1669 = vmatmul.mubr.bf16.gmra.mrb[0].mxu0 %v1606
  %v1670 = vpop.f32.mrb[0].mxu0
  %v1671 = vadd.f32 %v1515, %v1670
  %v1672 = vpop.f32.mrb[0].mxu0
  %v1673 = vpop.f32.mrb[0].mxu0
  %v1674 = vadd.f32 %v1520, %v1673
  %v1675 = vpop.f32.mrb[0].mxu0
  %1676 = vmatprep.mubr.bf16.mxu0 0
  %1677 = vmatmul.mubr.bf16.gmra.mrb[0].mxu0 %v1607
  %v1678 = vpop.f32.mrb[0].mxu0
  %v1679 = vadd.f32 %v1525, %v1678
  %v1680 = vpop.f32.mrb[0].mxu0
  %v1681 = vpop.f32.mrb[0].mxu0
  %v1682 = vadd.f32 %v1530, %v1681
  %v1683 = vpop.f32.mrb[0].mxu0
  %1684 = vmatprep.mubr.bf16.mxu0 0
  %1685 = vmatmul.mubr.bf16.gmra.mrb[0].mxu0 %v1608
  %v1686 = vpop.f32.mrb[0].mxu0
  %v1687 = vadd.f32 %v1535, %v1686
  %v1688 = vpop.f32.mrb[0].mxu0
  %v1689 = vpop.f32.mrb[0].mxu0
  %v1690 = vadd.f32 %v1540, %v1689
  %v1691 = vpop.f32.mrb[0].mxu0
  %1692 = vmatprep.mubr.bf16.mxu0 0
  %1693 = vmatmul.mubr.bf16.gmra.mrb[0].mxu0 %v1609
  %v1694 = vpop.f32.mrb[0].mxu0
  %v1695 = vadd.f32 %v1545, %v1694
  %v1696 = vpop.f32.mrb[0].mxu0
  %v1697 = vpop.f32.mrb[0].mxu0
  %v1698 = vadd.f32 %v1550, %v1697
  %v1699 = vpop.f32.mrb[0].mxu0
  %1700 = vmatprep.mubr.bf16.mxu0 0
  %1701 = vmatmul.mubr.bf16.gmra.mrb[0].mxu0 %v1610
  %v1702 = vpop.f32.mrb[0].mxu0
  %v1703 = vadd.f32 %v1555, %v1702
  %v1704 = vpop.f32.mrb[0].mxu0
  %v1705 = vpop.f32.mrb[0].mxu0
  %v1706 = vadd.f32 %v1560, %v1705
  %v1707 = vpop.f32.mrb[0].mxu0
  %1708 = vmatprep.mubr.bf16.mxu0 0
  %1709 = vmatmul.mubr.bf16.gmra.mrb[0].mxu0 %v1611
  %v1710 = vpop.f32.mrb[0].mxu0
  %v1711 = vadd.f32 %v1565, %v1710
  %v1712 = vpop.f32.mrb[0].mxu0
  %v1713 = vpop.f32.mrb[0].mxu0
  %v1714 = vadd.f32 %v1570, %v1713
  %v1715 = vpop.f32.mrb[0].mxu0
  %1716 = vdwg.mxu0
  %vm1717 = vcmp.gt.f32.partialorder %v1655, 0.0
  %vm1718 = vcmp.gt.f32.partialorder %v1658, 0.0
  %vm1719 = vcmp.gt.f32.partialorder %v1663, 0.0
  %vm1720 = vcmp.gt.f32.partialorder %v1666, 0.0
  %vm1721 = vcmp.gt.f32.partialorder %v1671, 0.0
  %vm1722 = vcmp.gt.f32.partialorder %v1674, 0.0
  %vm1723 = vcmp.gt.f32.partialorder %v1679, 0.0
  %vm1724 = vcmp.gt.f32.partialorder %v1682, 0.0
  %vm1725 = vcmp.gt.f32.partialorder %v1687, 0.0
  %vm1726 = vcmp.gt.f32.partialorder %v1690, 0.0
  %vm1727 = vcmp.gt.f32.partialorder %v1695, 0.0
  %vm1728 = vcmp.gt.f32.partialorder %v1698, 0.0
  %vm1729 = vcmp.gt.f32.partialorder %v1703, 0.0
  %vm1730 = vcmp.gt.f32.partialorder %v1706, 0.0
  %vm1731 = vcmp.gt.f32.partialorder %v1711, 0.0
  %vm1732 = vcmp.gt.f32.partialorder %v1714, 0.0
  %v1733 = vmin.f32 %v1655, 0.0
  %v1734 = vmin.f32 %v1658, 0.0
  %v1735 = vmin.f32 %v1663, 0.0
  %v1736 = vmin.f32 %v1666, 0.0
  %v1737 = vmin.f32 %v1671, 0.0
  %v1738 = vmin.f32 %v1674, 0.0
  %v1739 = vmin.f32 %v1679, 0.0
  %v1740 = vmin.f32 %v1682, 0.0
  %v1741 = vmin.f32 %v1687, 0.0
  %v1742 = vmin.f32 %v1690, 0.0
  %v1743 = vmin.f32 %v1695, 0.0
  %v1744 = vmin.f32 %v1698, 0.0
  %v1745 = vmin.f32 %v1703, 0.0
  %v1746 = vmin.f32 %v1706, 0.0
  %v1747 = vmin.f32 %v1711, 0.0
  %v1748 = vmin.f32 %v1714, 0.0
  %v1749 = vmul.f32 %v1733, 1.442695
  %v1750 = vpow.pop %v1749
  %v1751 = vmul.f32 %v1734, 1.442695
  %v1752 = vpow.pop %v1751
  %v1753 = vmul.f32 %v1735, 1.442695
  %v1754 = vpow.pop %v1753
  %v1755 = vmul.f32 %v1736, 1.442695
  %v1756 = vpow.pop %v1755
  %v1757 = vmul.f32 %v1737, 1.442695
  %v1758 = vpow.pop %v1757
  %v1759 = vmul.f32 %v1738, 1.442695
  %v1760 = vpow.pop %v1759
  %v1761 = vmul.f32 %v1739, 1.442695
  %v1762 = vpow.pop %v1761
  %v1763 = vmul.f32 %v1740, 1.442695
  %v1764 = vpow.pop %v1763
  %v1765 = vmul.f32 %v1741, 1.442695
  %v1766 = vpow.pop %v1765
  %v1767 = vmul.f32 %v1742, 1.442695
  %v1768 = vpow.pop %v1767
  %v1769 = vmul.f32 %v1743, 1.442695
  %v1770 = vpow.pop %v1769
  %v1771 = vmul.f32 %v1744, 1.442695
  %v1772 = vpow.pop %v1771
  %v1773 = vmul.f32 %v1745, 1.442695
  %v1774 = vpow.pop %v1773
  %v1775 = vmul.f32 %v1746, 1.442695
  %v1776 = vpow.pop %v1775
  %v1777 = vmul.f32 %v1747, 1.442695
  %v1778 = vpow.pop %v1777
  %v1779 = vmul.f32 %v1748, 1.442695
  %v1780 = vpow.pop %v1779
  %v1781 = vsub.f32 %v1750, 1.0
  %v1782 = vsub.f32 %v1752, 1.0
  %v1783 = vsub.f32 %v1754, 1.0
  %v1784 = vsub.f32 %v1756, 1.0
  %v1785 = vsub.f32 %v1758, 1.0
  %v1786 = vsub.f32 %v1760, 1.0
  %v1787 = vsub.f32 %v1762, 1.0
  %v1788 = vsub.f32 %v1764, 1.0
  %v1789 = vsub.f32 %v1766, 1.0
  %v1790 = vsub.f32 %v1768, 1.0
  %v1791 = vsub.f32 %v1770, 1.0
  %v1792 = vsub.f32 %v1772, 1.0
  %v1793 = vsub.f32 %v1774, 1.0
  %v1794 = vsub.f32 %v1776, 1.0
  %v1795 = vsub.f32 %v1778, 1.0
  %v1796 = vsub.f32 %v1780, 1.0
  %v1797 = vsel %vm1717, %v1655, %v1781
  %v1798 = vsel %vm1718, %v1658, %v1782
  %v1799 = vsel %vm1719, %v1663, %v1783
  %v1800 = vsel %vm1720, %v1666, %v1784
  %v1801 = vsel %vm1721, %v1671, %v1785
  %v1802 = vsel %vm1722, %v1674, %v1786
  %v1803 = vsel %vm1723, %v1679, %v1787
  %v1804 = vsel %vm1724, %v1682, %v1788
  %v1805 = vsel %vm1725, %v1687, %v1789
  %v1806 = vsel %vm1726, %v1690, %v1790
  %v1807 = vsel %vm1727, %v1695, %v1791
  %v1808 = vsel %vm1728, %v1698, %v1792
  %v1809 = vsel %vm1729, %v1703, %v1793
  %v1810 = vsel %vm1730, %v1706, %v1794
  %v1811 = vsel %vm1731, %v1711, %v1795
  %v1812 = vsel %vm1732, %v1714, %v1796
  %1813 = vset.pattern.permute.xlu0 1
  %1814 = vperm.xlu0 %1813, %v1476
  %v1815 = vpop.permute.xlu0 %1814
  %1817 = vset.pattern.permute.xlu0 1
  %1818 = vperm.xlu0 %1817, %v1477
  %v1819 = vpop.permute.xlu0 %1818
  %1821 = vset.pattern.permute.xlu0 1
  %1822 = vperm.xlu0 %1821, %v1478
  %v1823 = vpop.permute.xlu0 %1822
  %1825 = vset.pattern.permute.xlu0 1
  %1826 = vperm.xlu0 %1825, %v1479
  %v1827 = vpop.permute.xlu0 %1826
  %1829 = vset.pattern.permute.xlu0 1
  %1830 = vperm.xlu0 %1829, %v1480
  %v1831 = vpop.permute.xlu0 %1830
  %1833 = vset.pattern.permute.xlu0 1
  %1834 = vperm.xlu0 %1833, %v1481
  %v1835 = vpop.permute.xlu0 %1834
  %1837 = vset.pattern.permute.xlu0 1
  %1838 = vperm.xlu0 %1837, %v1482
  %v1839 = vpop.permute.xlu0 %1838
  %1841 = vset.pattern.permute.xlu0 1
  %1842 = vperm.xlu0 %1841, %v1483
  %v1843 = vpop.permute.xlu0 %1842
  %1845 = vset.pattern.permute.xlu0 1
  %1846 = vperm.xlu0 %1845, %v1484
  %v1847 = vpop.permute.xlu0 %1846
  %1849 = vset.pattern.permute.xlu0 1
  %1850 = vperm.xlu0 %1849, %v1485
  %v1851 = vpop.permute.xlu0 %1850
  %1853 = vset.pattern.permute.xlu0 1
  %1854 = vperm.xlu0 %1853, %v1486
  %v1855 = vpop.permute.xlu0 %1854
  %1857 = vset.pattern.permute.xlu0 1
  %1858 = vperm.xlu0 %1857, %v1487
  %v1859 = vpop.permute.xlu0 %1858
  %1861 = vset.pattern.permute.xlu0 1
  %1862 = vperm.xlu0 %1861, %v1488
  %v1863 = vpop.permute.xlu0 %1862
  %1865 = vset.pattern.permute.xlu0 1
  %1866 = vperm.xlu0 %1865, %v1489
  %v1867 = vpop.permute.xlu0 %1866
  %1869 = vset.pattern.permute.xlu0 1
  %1870 = vperm.xlu0 %1869, %v1490
  %v1871 = vpop.permute.xlu0 %1870
  %1873 = vset.pattern.permute.xlu0 1
  %1874 = vperm.xlu0 %1873, %v1491
  %v1875 = vpop.permute.xlu0 %1874
  %v1877 = vmul.f32 %v1797, %v1815
  %v1878 = vmul.f32 %v1798, %v1819
  %v1879 = vmul.f32 %v1799, %v1823
  %v1880 = vmul.f32 %v1800, %v1827
  %v1881 = vmul.f32 %v1801, %v1831
  %v1882 = vmul.f32 %v1802, %v1835
  %v1883 = vmul.f32 %v1803, %v1839
  %v1884 = vmul.f32 %v1804, %v1843
  %v1885 = vmul.f32 %v1805, %v1847
  %v1886 = vmul.f32 %v1806, %v1851
  %v1887 = vmul.f32 %v1807, %v1855
  %v1888 = vmul.f32 %v1808, %v1859
  %v1889 = vmul.f32 %v1809, %v1863
  %v1890 = vmul.f32 %v1810, %v1867
  %v1891 = vmul.f32 %v1811, %v1871
  %v1892 = vmul.f32 %v1812, %v1875
  %1893 = vset.pattern.permute.xlu0 2
  %1894 = vperm.xlu0 %1893, %v1476
  %v1895 = vpop.permute.xlu0 %1894
  %1897 = vset.pattern.permute.xlu0 2
  %1898 = vperm.xlu0 %1897, %v1477
  %v1899 = vpop.permute.xlu0 %1898
  %1901 = vset.pattern.permute.xlu0 2
  %1902 = vperm.xlu0 %1901, %v1478
  %v1903 = vpop.permute.xlu0 %1902
  %1905 = vset.pattern.permute.xlu0 2
  %1906 = vperm.xlu0 %1905, %v1479
  %v1907 = vpop.permute.xlu0 %1906
  %1909 = vset.pattern.permute.xlu0 2
  %1910 = vperm.xlu0 %1909, %v1480
  %v1911 = vpop.permute.xlu0 %1910
  %1913 = vset.pattern.permute.xlu0 2
  %1914 = vperm.xlu0 %1913, %v1481
  %v1915 = vpop.permute.xlu0 %1914
  %1917 = vset.pattern.permute.xlu0 2
  %1918 = vperm.xlu0 %1917, %v1482
  %v1919 = vpop.permute.xlu0 %1918
  %1921 = vset.pattern.permute.xlu0 2
  %1922 = vperm.xlu0 %1921, %v1483
  %v1923 = vpop.permute.xlu0 %1922
  %1925 = vset.pattern.permute.xlu0 2
  %1926 = vperm.xlu0 %1925, %v1484
  %v1927 = vpop.permute.xlu0 %1926
  %1929 = vset.pattern.permute.xlu0 2
  %1930 = vperm.xlu0 %1929, %v1485
  %v1931 = vpop.permute.xlu0 %1930
  %1933 = vset.pattern.permute.xlu0 2
  %1934 = vperm.xlu0 %1933, %v1486
  %v1935 = vpop.permute.xlu0 %1934
  %1937 = vset.pattern.permute.xlu0 2
  %1938 = vperm.xlu0 %1937, %v1487
  %v1939 = vpop.permute.xlu0 %1938
  %1941 = vset.pattern.permute.xlu0 2
  %1942 = vperm.xlu0 %1941, %v1488
  %v1943 = vpop.permute.xlu0 %1942
  %1945 = vset.pattern.permute.xlu0 2
  %1946 = vperm.xlu0 %1945, %v1489
  %v1947 = vpop.permute.xlu0 %1946
  %1949 = vset.pattern.permute.xlu0 2
  %1950 = vperm.xlu0 %1949, %v1490
  %v1951 = vpop.permute.xlu0 %1950
  %1953 = vset.pattern.permute.xlu0 2
  %1954 = vperm.xlu0 %1953, %v1491
  %v1955 = vpop.permute.xlu0 %1954
  %v1957 = vadd.f32 %v1877, %v1895
  %v1958 = vadd.f32 %v1878, %v1899
  %v1959 = vadd.f32 %v1879, %v1903
  %v1960 = vadd.f32 %v1880, %v1907
  %v1961 = vadd.f32 %v1881, %v1911
  %v1962 = vadd.f32 %v1882, %v1915
  %v1963 = vadd.f32 %v1883, %v1919
  %v1964 = vadd.f32 %v1884, %v1923
  %v1965 = vadd.f32 %v1885, %v1927
  %v1966 = vadd.f32 %v1886, %v1931
  %v1967 = vadd.f32 %v1887, %v1935
  %v1968 = vadd.f32 %v1888, %v1939
  %v1969 = vadd.f32 %v1889, %v1943
  %v1970 = vadd.f32 %v1890, %v1947
  %v1971 = vadd.f32 %v1891, %v1951
  %v1972 = vadd.f32 %v1892, %v1955
  %v1973 = vld [vmem:[%s12] sm:$0xf]
  %v1974 = vld [vmem:[%s12 + $0x4] sm:$0xf]
  %v1975 = vld [vmem:[%s12 + $0x8] sm:$0xf]
  %v1976 = vld [vmem:[%s12 + $0xc] sm:$0xf]
  %v1977 = vpack.c.bf16 %v916, %v915
  %v1978 = vpack.c.bf16 %v918, %v917
  %v1979 = vpack.c.bf16 %v920, %v919
  %v1980 = vpack.c.bf16 %v922, %v921
  %v1985 = vunpack.c.l.b16 %v1973
  %v1986 = vunpack.c.l.b16 %v1974
  %v1987 = vunpack.c.l.b16 %v1975
  %v1988 = vunpack.c.l.b16 %v1976
  %v1989 = vpack.c.b16 %v1986, %v1985
  %v1990 = vpack.c.b16 %v1988, %v1987
  %v1992 = vsel %vm432, %v1989, 0
  %v1995 = vsel %vm432, %v1990, 0
  %1997 = vmatprep.subr.bf16.mxu0 0
  %1998 = vmatpush1.bf16.msra.mxu0 %v1977
  %1999 = vmatprep.subr.bf16.mxu0 0
  %2000 = vmatpush1.bf16.msra.mxu0 %v1978
  %2001 = vmatprep.subr.bf16.mxu0 0
  %2002 = vmatpush1.bf16.msra.mxu0 %v1979
  %2003 = vmatprep.subr.bf16.mxu0 0
  %2004 = vmatpush1.bf16.msra.mxu0 %v1980
  %2005 = vmatprep.subr.bf16.mxu0 0
  %2006 = vmatpush1.bf16.msra.mxu0 0
  %2007 = vmatprep.subr.bf16.mxu0 0
  %2008 = vmatpush1.bf16.msra.mxu0 0
  %2009 = vmatprep.subr.bf16.mxu0 0
  %2010 = vmatpush1.bf16.msra.mxu0 0
  %2011 = vmatprep.subr.bf16.mxu0 0
  %2012 = vmatpush1.bf16.msra.mxu0 0
  %2013 = vmatprep.subr.bf16.mxu0 0
  %2014 = vmatpush1.bf16.msra.mxu0 0
  %2015 = vmatprep.subr.bf16.mxu0 0
  %2016 = vmatpush1.bf16.msra.mxu0 0
  %2017 = vmatprep.subr.bf16.mxu0 0
  %2018 = vmatpush1.bf16.msra.mxu0 0
  %2019 = vmatprep.subr.bf16.mxu0 0
  %2020 = vmatpush1.bf16.msra.mxu0 0
  %2021 = vmatprep.subr.bf16.mxu0 0
  %2022 = vmatpush1.bf16.msra.mxu0 0
  %2023 = vmatprep.subr.bf16.mxu0 0
  %2024 = vmatpush1.bf16.msra.mxu0 0
  %2025 = vmatprep.subr.bf16.mxu0 0
  %2026 = vmatpush1.bf16.msra.mxu0 0
  %2027 = vmatprep.subr.bf16.mxu0 0
  %2028 = vmatpush1.bf16.msra.mxu0 0
  %2029 = vmatprep.mubr.bf16.mxu0 0
  %2030 = vmatmul.mubr.bf16.gmra.mrb[0].mxu0 %v1992
  %v2031 = vpop.f32.mrb[0].mxu0
  %v2032 = vadd.f32 0.0, %v2031
  %v2033 = vpop.f32.mrb[0].mxu0
  %v2034 = vpop.f32.mrb[0].mxu0
  %v2035 = vadd.f32 0.0, %v2034
  %v2036 = vpop.f32.mrb[0].mxu0
  %2037 = vmatprep.mubr.bf16.mxu0 0
  %2038 = vmatmul.mubr.bf16.gmra.mrb[0].mxu0 %v1995
  %v2039 = vpop.f32.mrb[0].mxu0
  %v2040 = vadd.f32 0.0, %v2039
  %v2041 = vpop.f32.mrb[0].mxu0
  %v2042 = vpop.f32.mrb[0].mxu0
  %v2043 = vadd.f32 0.0, %v2042
  %v2044 = vpop.f32.mrb[0].mxu0
  %2045 = vdwg.mxu0
  %v2046 = vld [vmem:[%s13] sm:$0xf]
  %v2047 = vld [vmem:[%s13 + $0x4] sm:$0xf]
  %v2048 = vld [vmem:[%s13 + $0x8] sm:$0xf]
  %v2049 = vld [vmem:[%s13 + $0xc] sm:$0xf]
  %v2050 = vld [vmem:[%s13 + $0x10] sm:$0xf]
  %v2051 = vld [vmem:[%s13 + $0x14] sm:$0xf]
  %v2052 = vld [vmem:[%s13 + $0x18] sm:$0xf]
  %v2053 = vld [vmem:[%s13 + $0x1c] sm:$0xf]
  %v2054 = vld [vmem:[%s13 + $0x20] sm:$0xf]
  %v2055 = vld [vmem:[%s13 + $0x24] sm:$0xf]
  %v2056 = vld [vmem:[%s13 + $0x28] sm:$0xf]
  %v2057 = vld [vmem:[%s13 + $0x2c] sm:$0xf]
  %v2058 = vld [vmem:[%s13 + $0x30] sm:$0xf]
  %v2059 = vld [vmem:[%s13 + $0x34] sm:$0xf]
  %v2060 = vld [vmem:[%s13 + $0x38] sm:$0xf]
  %v2061 = vld [vmem:[%s13 + $0x3c] sm:$0xf]
  %v2078 = vunpack.c.l.b16 %v2046
  %v2079 = vunpack.c.l.b16 %v2047
  %v2080 = vunpack.c.l.b16 %v2048
  %v2081 = vunpack.c.l.b16 %v2049
  %v2082 = vunpack.c.l.b16 %v2050
  %v2083 = vunpack.c.l.b16 %v2051
  %v2084 = vunpack.c.l.b16 %v2052
  %v2085 = vunpack.c.l.b16 %v2053
  %v2086 = vunpack.c.l.b16 %v2054
  %v2087 = vunpack.c.l.b16 %v2055
  %v2088 = vunpack.c.l.b16 %v2056
  %v2089 = vunpack.c.l.b16 %v2057
  %v2090 = vunpack.c.l.b16 %v2058
  %v2091 = vunpack.c.l.b16 %v2059
  %v2092 = vunpack.c.l.b16 %v2060
  %v2093 = vunpack.c.l.b16 %v2061
  %v2094 = vpack.c.b16 %v2079, %v2078
  %v2095 = vpack.c.b16 %v2081, %v2080
  %v2096 = vpack.c.b16 %v2083, %v2082
  %v2097 = vpack.c.b16 %v2085, %v2084
  %v2098 = vpack.c.b16 %v2087, %v2086
  %v2099 = vpack.c.b16 %v2089, %v2088
  %v2100 = vpack.c.b16 %v2091, %v2090
  %v2101 = vpack.c.b16 %v2093, %v2092
  %v2103 = vsel %vm432, %v2094, 0
  %v2106 = vsel %vm432, %v2095, 0
  %v2109 = vsel %vm432, %v2096, 0
  %v2112 = vsel %vm432, %v2097, 0
  %v2115 = vsel %vm432, %v2098, 0
  %v2118 = vsel %vm432, %v2099, 0
  %v2121 = vsel %vm432, %v2100, 0
  %v2124 = vsel %vm432, %v2101, 0
  %2126 = vmatprep.subr.bf16.mxu0 0
  %2127 = vmatpush1.bf16.msra.mxu0 %v1977
  %2128 = vmatprep.subr.bf16.mxu0 0
  %2129 = vmatpush1.bf16.msra.mxu0 %v1978
  %2130 = vmatprep.subr.bf16.mxu0 0
  %2131 = vmatpush1.bf16.msra.mxu0 %v1979
  %2132 = vmatprep.subr.bf16.mxu0 0
  %2133 = vmatpush1.bf16.msra.mxu0 %v1980
  %2134 = vmatprep.subr.bf16.mxu0 0
  %2135 = vmatpush1.bf16.msra.mxu0 0
  %2136 = vmatprep.subr.bf16.mxu0 0
  %2137 = vmatpush1.bf16.msra.mxu0 0
  %2138 = vmatprep.subr.bf16.mxu0 0
  %2139 = vmatpush1.bf16.msra.mxu0 0
  %2140 = vmatprep.subr.bf16.mxu0 0
  %2141 = vmatpush1.bf16.msra.mxu0 0
  %2142 = vmatprep.subr.bf16.mxu0 0
  %2143 = vmatpush1.bf16.msra.mxu0 0
  %2144 = vmatprep.subr.bf16.mxu0 0
  %2145 = vmatpush1.bf16.msra.mxu0 0
  %2146 = vmatprep.subr.bf16.mxu0 0
  %2147 = vmatpush1.bf16.msra.mxu0 0
  %2148 = vmatprep.subr.bf16.mxu0 0
  %2149 = vmatpush1.bf16.msra.mxu0 0
  %2150 = vmatprep.subr.bf16.mxu0 0
  %2151 = vmatpush1.bf16.msra.mxu0 0
  %2152 = vmatprep.subr.bf16.mxu0 0
  %2153 = vmatpush1.bf16.msra.mxu0 0
  %2154 = vmatprep.subr.bf16.mxu0 0
  %2155 = vmatpush1.bf16.msra.mxu0 0
  %2156 = vmatprep.subr.bf16.mxu0 0
  %2157 = vmatpush1.bf16.msra.mxu0 0
  %2158 = vmatprep.mubr.bf16.mxu0 0
  %2159 = vmatmul.mubr.bf16.gmra.mrb[0].mxu0 %v2103
  %v2160 = vpop.f32.mrb[0].mxu0
  %v2161 = vadd.f32 0.0, %v2160
  %v2162 = vpop.f32.mrb[0].mxu0
  %v2163 = vpop.f32.mrb[0].mxu0
  %v2164 = vadd.f32 0.0, %v2163
  %v2165 = vpop.f32.mrb[0].mxu0
  %2166 = vmatprep.mubr.bf16.mxu0 0
  %2167 = vmatmul.mubr.bf16.gmra.mrb[0].mxu0 %v2106
  %v2168 = vpop.f32.mrb[0].mxu0
  %v2169 = vadd.f32 0.0, %v2168
  %v2170 = vpop.f32.mrb[0].mxu0
  %v2171 = vpop.f32.mrb[0].mxu0
  %v2172 = vadd.f32 0.0, %v2171
  %v2173 = vpop.f32.mrb[0].mxu0
  %2174 = vmatprep.mubr.bf16.mxu0 0
  %2175 = vmatmul.mubr.bf16.gmra.mrb[0].mxu0 %v2109
  %v2176 = vpop.f32.mrb[0].mxu0
  %v2177 = vadd.f32 0.0, %v2176
  %v2178 = vpop.f32.mrb[0].mxu0
  %v2179 = vpop.f32.mrb[0].mxu0
  %v2180 = vadd.f32 0.0, %v2179
  %v2181 = vpop.f32.mrb[0].mxu0
  %2182 = vmatprep.mubr.bf16.mxu0 0
  %2183 = vmatmul.mubr.bf16.gmra.mrb[0].mxu0 %v2112
  %v2184 = vpop.f32.mrb[0].mxu0
  %v2185 = vadd.f32 0.0, %v2184
  %v2186 = vpop.f32.mrb[0].mxu0
  %v2187 = vpop.f32.mrb[0].mxu0
  %v2188 = vadd.f32 0.0, %v2187
  %v2189 = vpop.f32.mrb[0].mxu0
  %2190 = vmatprep.mubr.bf16.mxu0 0
  %2191 = vmatmul.mubr.bf16.gmra.mrb[0].mxu0 %v2115
  %v2192 = vpop.f32.mrb[0].mxu0
  %v2193 = vadd.f32 0.0, %v2192
  %v2194 = vpop.f32.mrb[0].mxu0
  %v2195 = vpop.f32.mrb[0].mxu0
  %v2196 = vadd.f32 0.0, %v2195
  %v2197 = vpop.f32.mrb[0].mxu0
  %2198 = vmatprep.mubr.bf16.mxu0 0
  %2199 = vmatmul.mubr.bf16.gmra.mrb[0].mxu0 %v2118
  %v2200 = vpop.f32.mrb[0].mxu0
  %v2201 = vadd.f32 0.0, %v2200
  %v2202 = vpop.f32.mrb[0].mxu0
  %v2203 = vpop.f32.mrb[0].mxu0
  %v2204 = vadd.f32 0.0, %v2203
  %v2205 = vpop.f32.mrb[0].mxu0
  %2206 = vmatprep.mubr.bf16.mxu0 0
  %2207 = vmatmul.mubr.bf16.gmra.mrb[0].mxu0 %v2121
  %v2208 = vpop.f32.mrb[0].mxu0
  %v2209 = vadd.f32 0.0, %v2208
  %v2210 = vpop.f32.mrb[0].mxu0
  %v2211 = vpop.f32.mrb[0].mxu0
  %v2212 = vadd.f32 0.0, %v2211
  %v2213 = vpop.f32.mrb[0].mxu0
  %2214 = vmatprep.mubr.bf16.mxu0 0
  %2215 = vmatmul.mubr.bf16.gmra.mrb[0].mxu0 %v2124
  %v2216 = vpop.f32.mrb[0].mxu0
  %v2217 = vadd.f32 0.0, %v2216
  %v2218 = vpop.f32.mrb[0].mxu0
  %v2219 = vpop.f32.mrb[0].mxu0
  %v2220 = vadd.f32 0.0, %v2219
  %v2221 = vpop.f32.mrb[0].mxu0
  %2222 = vdwg.mxu0
  %v2223 = vld [vmem:[%s14] sm:$0xf]
  %v2224 = vld [vmem:[%s14 + $0x4] sm:$0xf]
  %v2225 = vld [vmem:[%s14 + $0x8] sm:$0xf]
  %v2226 = vld [vmem:[%s14 + $0xc] sm:$0xf]
  %v2227 = vmul.f32 %v60, %v2032
  %v2228 = vmul.f32 %v61, %v2035
  %v2229 = vmul.f32 %v62, %v2040
  %v2230 = vmul.f32 %v63, %v2043
  %v2231 = vpack.c.bf16 %v2228, %v2227
  %v2232 = vpack.c.bf16 %v2230, %v2229
  %v2233 = vld [vmem:[%s15] sm:$0xf]
  %v2234 = vld [vmem:[%s15 + $0x4] sm:$0xf]
  %v2235 = vld [vmem:[%s15 + $0x8] sm:$0xf]
  %v2236 = vld [vmem:[%s15 + $0xc] sm:$0xf]
  %v2237 = vmul.f32 %v1957, %v2161
  %v2238 = vmul.f32 %v1958, %v2164
  %v2239 = vmul.f32 %v1959, %v2169
  %v2240 = vmul.f32 %v1960, %v2172
  %v2241 = vmul.f32 %v1961, %v2177
  %v2242 = vmul.f32 %v1962, %v2180
  %v2243 = vmul.f32 %v1963, %v2185
  %v2244 = vmul.f32 %v1964, %v2188
  %v2245 = vmul.f32 %v1965, %v2193
  %v2246 = vmul.f32 %v1966, %v2196
  %v2247 = vmul.f32 %v1967, %v2201
  %v2248 = vmul.f32 %v1968, %v2204
  %v2249 = vmul.f32 %v1969, %v2209
  %v2250 = vmul.f32 %v1970, %v2212
  %v2251 = vmul.f32 %v1971, %v2217
  %v2252 = vmul.f32 %v1972, %v2220
  %v2253 = vpack.c.bf16 %v2238, %v2237
  %v2254 = vpack.c.bf16 %v2240, %v2239
  %v2255 = vpack.c.bf16 %v2242, %v2241
  %v2256 = vpack.c.bf16 %v2244, %v2243
  %v2257 = vpack.c.bf16 %v2246, %v2245
  %v2258 = vpack.c.bf16 %v2248, %v2247
  %v2259 = vpack.c.bf16 %v2250, %v2249
  %v2260 = vpack.c.bf16 %v2252, %v2251
  %v2265 = vunpack.c.l.b16 %v2233
  %v2266 = vunpack.c.l.b16 %v2234
  %v2267 = vunpack.c.l.b16 %v2235
  %v2268 = vunpack.c.l.b16 %v2236
  %v2269 = vpack.c.b16 %v2266, %v2265
  %v2270 = vpack.c.b16 %v2268, %v2267
  %2273 = vmatprep.subr.bf16.mxu0 0
  %2274 = vmatpush1.bf16.msra.mxu0 %v2253
  %2275 = vmatprep.subr.bf16.mxu0 0
  %2276 = vmatpush1.bf16.msra.mxu0 %v2254
  %2277 = vmatprep.subr.bf16.mxu0 0
  %2278 = vmatpush1.bf16.msra.mxu0 %v2255
  %2279 = vmatprep.subr.bf16.mxu0 0
  %2280 = vmatpush1.bf16.msra.mxu0 %v2256
  %2281 = vmatprep.subr.bf16.mxu0 0
  %2282 = vmatpush1.bf16.msra.mxu0 %v2257
  %2283 = vmatprep.subr.bf16.mxu0 0
  %2284 = vmatpush1.bf16.msra.mxu0 %v2258
  %2285 = vmatprep.subr.bf16.mxu0 0
  %2286 = vmatpush1.bf16.msra.mxu0 %v2259
  %2287 = vmatprep.subr.bf16.mxu0 0
  %2288 = vmatpush1.bf16.msra.mxu0 %v2260
  %2289 = vmatprep.subr.bf16.mxu0 0
  %2290 = vmatpush1.bf16.msra.mxu0 0
  %2291 = vmatprep.subr.bf16.mxu0 0
  %2292 = vmatpush1.bf16.msra.mxu0 0
  %2293 = vmatprep.subr.bf16.mxu0 0
  %2294 = vmatpush1.bf16.msra.mxu0 0
  %2295 = vmatprep.subr.bf16.mxu0 0
  %2296 = vmatpush1.bf16.msra.mxu0 0
  %2297 = vmatprep.subr.bf16.mxu0 0
  %2298 = vmatpush1.bf16.msra.mxu0 0
  %2299 = vmatprep.subr.bf16.mxu0 0
  %2300 = vmatpush1.bf16.msra.mxu0 0
  %2301 = vmatprep.subr.bf16.mxu0 0
  %2302 = vmatpush1.bf16.msra.mxu0 0
  %2303 = vmatprep.subr.bf16.mxu0 0
  %2304 = vmatpush1.bf16.msra.mxu0 0
  %2305 = vmatprep.mubr.bf16.mxu0 0
  %2306 = vmatmul.mubr.bf16.gmra.mrb[0].mxu0 %v2269
  %v2307 = vpop.f32.mrb[0].mxu0
  %v2308 = vadd.f32 0.0, %v2307
  %v2309 = vpop.f32.mrb[0].mxu0
  %v2310 = vpop.f32.mrb[0].mxu0
  %v2311 = vadd.f32 0.0, %v2310
  %v2312 = vpop.f32.mrb[0].mxu0
  %2313 = vmatprep.mubr.bf16.mxu0 0
  %2314 = vmatmul.mubr.bf16.gmra.mrb[0].mxu0 %v2270
  %v2315 = vpop.f32.mrb[0].mxu0
  %v2316 = vadd.f32 0.0, %v2315
  %v2317 = vpop.f32.mrb[0].mxu0
  %v2318 = vpop.f32.mrb[0].mxu0
  %v2319 = vadd.f32 0.0, %v2318
  %v2320 = vpop.f32.mrb[0].mxu0
  %2321 = vdwg.mxu0
  %v2326 = vunpack.c.l.b16 %v2223
  %v2327 = vunpack.c.l.b16 %v2224
  %v2328 = vunpack.c.l.b16 %v2225
  %v2329 = vunpack.c.l.b16 %v2226
  %v2330 = vpack.c.b16 %v2327, %v2326
  %v2331 = vpack.c.b16 %v2329, %v2328
  %vm2332 = vcmask 261120
  %v2334 = vsel %vm2332, %v2330, 0
  %v2337 = vsel %vm2332, %v2331, 0
  %2339 = vmatprep.subr.bf16.mxu0 0
  %2340 = vmatpush1.bf16.msra.mxu0 %v2231
  %2341 = vmatprep.subr.bf16.mxu0 0
  %2342 = vmatpush1.bf16.msra.mxu0 %v2232
  %2343 = vmatprep.subr.bf16.mxu0 0
  %2344 = vmatpush1.bf16.msra.mxu0 0
  %2345 = vmatprep.subr.bf16.mxu0 0
  %2346 = vmatpush1.bf16.msra.mxu0 0
  %2347 = vmatprep.subr.bf16.mxu0 0
  %2348 = vmatpush1.bf16.msra.mxu0 0
  %2349 = vmatprep.subr.bf16.mxu0 0
  %2350 = vmatpush1.bf16.msra.mxu0 0
  %2351 = vmatprep.subr.bf16.mxu0 0
  %2352 = vmatpush1.bf16.msra.mxu0 0
  %2353 = vmatprep.subr.bf16.mxu0 0
  %2354 = vmatpush1.bf16.msra.mxu0 0
  %2355 = vmatprep.subr.bf16.mxu0 0
  %2356 = vmatpush1.bf16.msra.mxu0 0
  %2357 = vmatprep.subr.bf16.mxu0 0
  %2358 = vmatpush1.bf16.msra.mxu0 0
  %2359 = vmatprep.subr.bf16.mxu0 0
  %2360 = vmatpush1.bf16.msra.mxu0 0
  %2361 = vmatprep.subr.bf16.mxu0 0
  %2362 = vmatpush1.bf16.msra.mxu0 0
  %2363 = vmatprep.subr.bf16.mxu0 0
  %2364 = vmatpush1.bf16.msra.mxu0 0
  %2365 = vmatprep.subr.bf16.mxu0 0
  %2366 = vmatpush1.bf16.msra.mxu0 0
  %2367 = vmatprep.subr.bf16.mxu0 0
  %2368 = vmatpush1.bf16.msra.mxu0 0
  %2369 = vmatprep.subr.bf16.mxu0 0
  %2370 = vmatpush1.bf16.msra.mxu0 0
  %2371 = vmatprep.mubr.bf16.mxu0 0
  %2372 = vmatmul.mubr.bf16.gmra.mrb[0].mxu0 %v2334
  %v2373 = vpop.f32.mrb[0].mxu0
  %v2374 = vadd.f32 %v2308, %v2373
  %v2375 = vpop.f32.mrb[0].mxu0
  %v2376 = vpop.f32.mrb[0].mxu0
  %v2377 = vadd.f32 %v2311, %v2376
  %v2378 = vpop.f32.mrb[0].mxu0
  %2379 = vmatprep.mubr.bf16.mxu0 0
  %2380 = vmatmul.mubr.bf16.gmra.mrb[0].mxu0 %v2337
  %v2381 = vpop.f32.mrb[0].mxu0
  %v2382 = vadd.f32 %v2316, %v2381
  %v2383 = vpop.f32.mrb[0].mxu0
  %v2384 = vpop.f32.mrb[0].mxu0
  %v2385 = vadd.f32 %v2319, %v2384
  %v2386 = vpop.f32.mrb[0].mxu0
  %2387 = vdwg.mxu0
  %v2388 = vld [vmem:[%s16] sm:$0xff]
  %v2389 = vld [vmem:[%s16 + $0x8] sm:$0xff]
  %v2390 = vld [vmem:[%s16 + $0x10] sm:$0xff]
  %v2391 = vld [vmem:[%s16 + $0x18] sm:$0xff]
  %2393 = vset.pattern.permute.xlu0 0
  %2394 = vperm.xlu0 %2393, %v2388
  %v2395 = vpop.permute.xlu0 %2394
  %2398 = vset.pattern.permute.xlu0 0
  %2399 = vperm.xlu0 %2398, %v2389
  %v2400 = vpop.permute.xlu0 %2399
  %2403 = vset.pattern.permute.xlu0 0
  %2404 = vperm.xlu0 %2403, %v2390
  %v2405 = vpop.permute.xlu0 %2404
  %2408 = vset.pattern.permute.xlu0 0
  %2409 = vperm.xlu0 %2408, %v2391
  %v2410 = vpop.permute.xlu0 %2409
  %v2412 = vadd.f32 %v2374, %v2395
  %v2413 = vadd.f32 %v2377, %v2400
  %v2414 = vadd.f32 %v2382, %v2405
  %v2415 = vadd.f32 %v2385, %v2410
  %vm2416 = vcmp.gt.f32.partialorder %v2412, 0.0
  %vm2417 = vcmp.gt.f32.partialorder %v2413, 0.0
  %vm2418 = vcmp.gt.f32.partialorder %v2414, 0.0
  %vm2419 = vcmp.gt.f32.partialorder %v2415, 0.0
  %v2420 = vmin.f32 %v2412, 0.0
  %v2421 = vmin.f32 %v2413, 0.0
  %v2422 = vmin.f32 %v2414, 0.0
  %v2423 = vmin.f32 %v2415, 0.0
  %v2424 = vmul.f32 %v2420, 1.442695
  %v2425 = vpow.pop %v2424
  %v2426 = vmul.f32 %v2421, 1.442695
  %v2427 = vpow.pop %v2426
  %v2428 = vmul.f32 %v2422, 1.442695
  %v2429 = vpow.pop %v2428
  %v2430 = vmul.f32 %v2423, 1.442695
  %v2431 = vpow.pop %v2430
  %v2432 = vsub.f32 %v2425, 1.0
  %v2433 = vsub.f32 %v2427, 1.0
  %v2434 = vsub.f32 %v2429, 1.0
  %v2435 = vsub.f32 %v2431, 1.0
  %v2436 = vsel %vm2416, %v2412, %v2432
  %v2437 = vsel %vm2417, %v2413, %v2433
  %v2438 = vsel %vm2418, %v2414, %v2434
  %v2439 = vsel %vm2419, %v2415, %v2435
  %2440 = vset.pattern.permute.xlu0 1
  %2441 = vperm.xlu0 %2440, %v2388
  %v2442 = vpop.permute.xlu0 %2441
  %2444 = vset.pattern.permute.xlu0 1
  %2445 = vperm.xlu0 %2444, %v2389
  %v2446 = vpop.permute.xlu0 %2445
  %2448 = vset.pattern.permute.xlu0 1
  %2449 = vperm.xlu0 %2448, %v2390
  %v2450 = vpop.permute.xlu0 %2449
  %2452 = vset.pattern.permute.xlu0 1
  %2453 = vperm.xlu0 %2452, %v2391
  %v2454 = vpop.permute.xlu0 %2453
  %v2456 = vmul.f32 %v2436, %v2442
  %v2457 = vmul.f32 %v2437, %v2446
  %v2458 = vmul.f32 %v2438, %v2450
  %v2459 = vmul.f32 %v2439, %v2454
  %2460 = vset.pattern.permute.xlu0 2
  %2461 = vperm.xlu0 %2460, %v2388
  %v2462 = vpop.permute.xlu0 %2461
  %2464 = vset.pattern.permute.xlu0 2
  %2465 = vperm.xlu0 %2464, %v2389
  %v2466 = vpop.permute.xlu0 %2465
  %2468 = vset.pattern.permute.xlu0 2
  %2469 = vperm.xlu0 %2468, %v2390
  %v2470 = vpop.permute.xlu0 %2469
  %2472 = vset.pattern.permute.xlu0 2
  %2473 = vperm.xlu0 %2472, %v2391
  %v2474 = vpop.permute.xlu0 %2473
  %v2476 = vadd.f32 %v2456, %v2462
  %v2477 = vadd.f32 %v2457, %v2466
  %v2478 = vadd.f32 %v2458, %v2470
  %v2479 = vadd.f32 %v2459, %v2474
  %2480 = vst [vmem:[%s17] sm:$0xff] %v2476
  %2481 = vst [vmem:[%s17 + $0x8] sm:$0xff] %v2477
  %2482 = vst [vmem:[%s17 + $0x10] sm:$0xff] %v2478
  %2483 = vst [vmem:[%s17 + $0x18] sm:$0xff] %v2479
  // Predicated region
  $region70: #{xconv_forward.1} parent=0 // pred_check
    _
  $region71: #{xconv_forward.1} parent=0 // pred_check_branch
    %2485 = sbr.rel (0) target = $region73
  $region72: #{xconv_forward.1} parent=0 // pred_region
    _
  $region73: #{xconv_forward.1} parent=0 // pred_fallthru
    _
  // Predicated region
  $region74: #{xconv_forward.1} parent=0 // pred_check
    _
  $region75: #{xconv_forward.1} parent=0 // pred_check_branch
    %2487 = sbr.rel (0) target = $region77
  $region76: #{xconv_forward.1} parent=0 // pred_region
    _
  $region77: #{xconv_forward.1} parent=0 // pred_fallthru
    _

</llo_original>
